<compile_context>
chip_gen: v7x
topology: tpu7x:2x2x1
jax: 0.10.0
libtpu: 0.0.40
codegen_flags: <defaults>
</compile_context>

<pallas_src>
import functools

import numpy as np

import jax
import jax.numpy as jnp
from jax.experimental import pallas as pl
from jax.experimental.pallas import tpu as pltpu


# ----------------------- static network configuration -----------------------
# DQNNetwork fixes map_size=(12, 7), map_channels=4, map_action=5.
MAP_H, MAP_W = 12, 7
C_IN = 4
N_ACT = 5
HIDDEN = 64          # config.FCHiddenSize (same value the reference uses)
HIDDEN_PAD = 128     # fc widths zero-padded to a full 128-lane vreg
OUT_PAD = 128        # padded Q-value row (sliced to 5 in the wrapper)

# Per-conv static geometry (hp = padded input height, wp = padded input width):
#   conv1: k5 p1 d1 : 12x7 -> 10x5    conv2: k3 p1 d1 : 10x5 -> 10x5
#   conv3: k3 p1 d2 : 10x5 -> 8x3
_L1 = dict(cin=4,  cout=16, k=5, dil=1, hout=10, wout=5, hp=14, wp=9)    # lanes 9*4  = 36
_L2 = dict(cin=16, cout=32, k=3, dil=1, hout=10, wout=5, hp=12, wp=7)    # lanes 7*16 = 112
_L3 = dict(cin=32, cout=32, k=3, dil=2, hout=8,  wout=3, hp=12, wp=7)    # lanes 7*32 = 224
H3, W3, C3 = 8, 3, 32                # conv3 output geometry
WC3 = W3 * C3                        # = 96, per-row flattened width
SLOT = 128                           # lane slot per conv3 spatial row in the flatten buffer
FLAT = H3 * W3 * C3                  # = 768 = fc1 in_features (torch)
FLAT_PAD = H3 * SLOT                 # = 1024 = padded fc1 K dimension


# ------------------------------ fused kernel --------------------------------

def _banded_conv(src_ref, w_ref, b_ref, spec, batch):
    """One conv layer for the whole batch: k accumulated MXU matmuls.  The LHS
    for tap ki is the full-width row window src[ki*dil : ki*dil + M, :] with
    M = (B-1)*hp + hout (junk rows between samples are computed but discarded
    by the caller).  Returns relu(conv + bias) of shape (M, wout*cout[_pad])."""
    k, dil, hp, hout = spec["k"], spec["dil"], spec["hp"], spec["hout"]
    kin = spec["wp"] * spec["cin"]                 # per-ki band rows == scratch lane width
    m = (batch - 1) * hp + hout
    acc = jnp.dot(src_ref[0:m, :], w_ref[0:kin, :],
                  preferred_element_type=jnp.float32)
    for ki in range(1, k):
        acc += jnp.dot(src_ref[ki * dil: ki * dil + m, :],
                       w_ref[ki * kin:(ki + 1) * kin, :],
                       preferred_element_type=jnp.float32)
    return jnp.maximum(acc + b_ref[...], 0.0)


def _dqn_kernel(x_ref,
                w1, b1, w2, b2, w3, b3,
                wf1, bf1, wf2, bf2, wf3, bf3, wf4, bf4,
                o_ref,
                s1, s2, s3, s4, *, batch):
    f32 = jnp.float32
    # Zero the padded conv-input buffers once (realises Conv2d zero padding).
    s1[...] = jnp.zeros(s1.shape, f32)
    s2[...] = jnp.zeros(s2.shape, f32)
    s3[...] = jnp.zeros(s3.shape, f32)

    # Stage the channels-last input rows into conv1's padded buffer interior.
    for b in range(batch):
        s1[b * _L1["hp"] + 1: b * _L1["hp"] + 1 + MAP_H, C_IN: C_IN + MAP_W * C_IN] = \
            x_ref[b * MAP_H:(b + 1) * MAP_H, :]

    # conv1: 5 matmuls total (batch folded into M).
    y1 = _banded_conv(s1, w1, b1, _L1, batch)                       # (M1, 80)
    for b in range(batch):
        s2[b * _L2["hp"] + 1: b * _L2["hp"] + 1 + _L1["hout"],
           _L2["cin"]: _L2["cin"] + _L1["wout"] * _L1["cout"]] = \
            y1[b * _L1["hp"]: b * _L1["hp"] + _L1["hout"], :]

    # conv2: 3 matmuls total.
    y2 = _banded_conv(s2, w2, b2, _L2, batch)                       # (M2, 160)
    for b in range(batch):
        s3[b * _L3["hp"] + 1: b * _L3["hp"] + 1 + _L2["hout"],
           _L3["cin"]: _L3["cin"] + _L2["wout"] * _L2["cout"]] = \
            y2[b * _L2["hp"]: b * _L2["hp"] + _L2["hout"], :]

    # conv3: 3 matmuls total; output lanes pre-padded to 128 (exact zeros in 96:128).
    y3 = _banded_conv(s3, w3, b3, _L3, batch)                       # (M3, 128)

    # Flatten: each (b, h) conv3 row lands in a 128-lane-aligned slot of s4 row b.
    for b in range(batch):
        for p in range(H3):
            s4[b: b + 1, p * SLOT:(p + 1) * SLOT] = \
                y3[b * _L3["hp"] + p: b * _L3["hp"] + p + 1, :]

    # Fused 4-layer MLP over the whole batch (single dot per layer).
    # TODO(synk): nn.Dropout(0.5) layers are identity in eval mode; training-mode RNG dropout not implemented.
    flat = s4[...]                                                  # (B, 1024)
    h = jnp.maximum(jnp.dot(flat, wf1[...], preferred_element_type=jnp.float32) + bf1[...], 0.0)
    h = jnp.maximum(jnp.dot(h, wf2[...], preferred_element_type=jnp.float32) + bf2[...], 0.0)
    h = jnp.maximum(jnp.dot(h, wf3[...], preferred_element_type=jnp.float32) + bf3[...], 0.0)
    o_ref[...] = jnp.dot(h, wf4[...], preferred_element_type=jnp.float32) + bf4[...]


# -------------------------------- wrapper ------------------------------------

def dqn_forward(x, params):
    """x: (B, 4, 12, 7) NCHW float32 (PyTorch convention) -> (B, 5) Q-values."""
    B = x.shape[0]
    # One tiny relayout at the network boundary: NCHW -> rows=(b,h), cols=(w,c).
    x2d = jnp.transpose(x, (0, 2, 3, 1)).reshape(B * MAP_H, MAP_W * C_IN).astype(jnp.float32)

    kernel = functools.partial(_dqn_kernel, batch=B)

    m1 = (B - 1) * _L1["hp"] + _L1["hout"]
    m2 = (B - 1) * _L2["hp"] + _L2["hout"]
    m3 = (B - 1) * _L3["hp"] + _L3["hout"]
    flops = int(2 * (m1 * 36 * 80 * 5                      # conv1
                     + m2 * 112 * 160 * 3                  # conv2
                     + m3 * 224 * 128 * 3                  # conv3
                     + B * (FLAT_PAD * HIDDEN_PAD          # fc1
                            + 2 * HIDDEN_PAD * HIDDEN_PAD  # fc2, fc3
                            + HIDDEN_PAD * OUT_PAD)))      # fc4
    bytes_accessed = int(x2d.size * 4 + sum(int(p.size) * 4 for p in params)
                         + B * OUT_PAD * 4)

    vmem_spec = pl.BlockSpec(memory_space=pltpu.MemorySpace.VMEM)
    out = pl.pallas_call(
        kernel,
        out_shape=jax.ShapeDtypeStruct((B, OUT_PAD), jnp.float32),
        in_specs=[vmem_spec] * (1 + len(params)),
        out_specs=vmem_spec,
        scratch_shapes=[
            pltpu.VMEM((B * _L1["hp"], _L1["wp"] * _L1["cin"]), jnp.float32),  # conv1 padded input
            pltpu.VMEM((B * _L2["hp"], _L2["wp"] * _L2["cin"]), jnp.float32),  # conv2 padded input
            pltpu.VMEM((B * _L3["hp"], _L3["wp"] * _L3["cin"]), jnp.float32),  # conv3 padded input
            pltpu.VMEM((B, FLAT_PAD), jnp.float32),                            # flatten staging
        ],
        cost_estimate=pl.CostEstimate(flops=flops, transcendentals=0,
                                      bytes_accessed=bytes_accessed),
    )(x2d, *params)
    return out[:, :N_ACT]


# --------------------------- parameter handling ------------------------------

def init_raw_params(key, fc_hidden=HIDDEN):
    """Raw parameters in PyTorch layouts: conv OIHW, linear as (in, out)."""
    ks = jax.random.split(key, 14)

    def init(k, shape, fan_in):
        return jax.random.normal(k, shape, jnp.float32) / jnp.sqrt(fan_in)

    wc1 = init(ks[0], (16, C_IN, 5, 5), C_IN * 25); bc1 = init(ks[1], (16,), C_IN * 25)
    wc2 = init(ks[2], (32, 16, 3, 3), 16 * 9);      bc2 = init(ks[3], (32,), 16 * 9)
    wc3 = init(ks[4], (32, 32, 3, 3), 32 * 9);      bc3 = init(ks[5], (32,), 32 * 9)
    wf1 = init(ks[6], (FLAT, fc_hidden), FLAT);     bf1 = init(ks[7], (fc_hidden,), FLAT)
    wf2 = init(ks[8], (fc_hidden, fc_hidden), fc_hidden); bf2 = init(ks[9], (fc_hidden,), fc_hidden)
    wf3 = init(ks[10], (fc_hidden, fc_hidden), fc_hidden); bf3 = init(ks[11], (fc_hidden,), fc_hidden)
    wf4 = init(ks[12], (fc_hidden, N_ACT), fc_hidden);     bf4 = init(ks[13], (N_ACT,), fc_hidden)
    return ((wc1, bc1), (wc2, bc2), (wc3, bc3),
            (wf1, bf1), (wf2, bf2), (wf3, bf3), (wf4, bf4))


def prepare_params(raw):
    """One-time transform into the kernel's layouts (done at init, not per call):
       conv OIHW -> per-ki banded matrices (kj taps folded into the RHS), biases
       tiled per output column block; conv3 output lanes padded to 128; fc1 rows
       permuted from torch NCHW-flatten order to the kernel's (h-slot, w, c)
       order with zero rows for the pad lanes; fc widths padded to 128 lanes."""
    (wc1, bc1), (wc2, bc2), (wc3, bc3), (wf1, bf1), (wf2, bf2), (wf3, bf3), (wf4, bf4) = raw

    def conv_banded(w_oihw, wout, dil, col_pad=0):
        w = np.asarray(w_oihw, np.float32)
        cout, cin, kh, kw = w.shape
        wp = wout + (kw - 1) * dil
        out = np.zeros((kh * wp * cin, wout * cout + col_pad), np.float32)
        for ki in range(kh):
            for kj in range(kw):
                wt = w[:, :, ki, kj].T                         # (cin, cout)
                for u in range(wout):
                    r0 = ki * wp * cin + (u + kj * dil) * cin
                    out[r0:r0 + cin, u * cout:(u + 1) * cout] = wt
        return jnp.asarray(out)

    def conv_bias(bias, wout, pad=0):
        row = np.tile(np.asarray(bias, np.float32), wout)
        if pad:
            row = np.pad(row, (0, pad))
        return jnp.asarray(row[None, :])

    w1b = conv_banded(wc1, _L1["wout"], _L1["dil"])                    # (180, 80)
    w2b = conv_banded(wc2, _L2["wout"], _L2["dil"])                    # (336, 160)
    w3b = conv_banded(wc3, _L3["wout"], _L3["dil"], col_pad=SLOT - WC3)  # (672, 128)
    b1r = conv_bias(bc1, _L1["wout"])
    b2r = conv_bias(bc2, _L2["wout"])
    b3r = conv_bias(bc3, _L3["wout"], pad=SLOT - WC3)

    # fc1: kernel feature order r = p*128 + w*C3 + c (p = conv3 spatial row slot);
    # torch NCHW-flatten order k = c*(H3*W3) + p*W3 + w. Pad lanes (96..127 of
    # each slot) keep zero rows; they only ever multiply exact-zero activations.
    hid = int(np.asarray(wf1).shape[1])
    wf1_raw = np.asarray(wf1, np.float32)
    wf1k = np.zeros((FLAT_PAD, HIDDEN_PAD), np.float32)
    pp = np.arange(H3)[:, None, None]
    ww = np.arange(W3)[None, :, None]
    cc = np.arange(C3)[None, None, :]
    dst = (pp * SLOT + ww * C3 + cc).reshape(-1)
    src = (cc * (H3 * W3) + pp * W3 + ww).reshape(-1)
    wf1k[dst, :hid] = wf1_raw[src, :]

    padc = HIDDEN_PAD - hid
    wf2k = np.pad(np.asarray(wf2, np.float32), ((0, padc), (0, padc)))
    wf3k = np.pad(np.asarray(wf3, np.float32), ((0, padc), (0, padc)))
    wf4k = np.pad(np.asarray(wf4, np.float32), ((0, padc), (0, OUT_PAD - N_ACT)))
    bf1k = np.pad(np.asarray(bf1, np.float32), (0, padc))[None, :]
    bf2k = np.pad(np.asarray(bf2, np.float32), (0, padc))[None, :]
    bf3k = np.pad(np.asarray(bf3, np.float32), (0, padc))[None, :]
    bf4k = np.pad(np.asarray(bf4, np.float32), (0, OUT_PAD - N_ACT))[None, :]

    return (w1b, b1r, w2b, b2r, w3b, b3r,
            jnp.asarray(wf1k), jnp.asarray(bf1k),
            jnp.asarray(wf2k), jnp.asarray(bf2k),
            jnp.asarray(wf3k), jnp.asarray(bf3k),
            jnp.asarray(wf4k), jnp.asarray(bf4k))


# ------------------------------- reference -----------------------------------

def reference_forward(x, raw):
    (wc1, bc1), (wc2, bc2), (wc3, bc3), (wf1, bf1), (wf2, bf2), (wf3, bf3), (wf4, bf4) = raw

    def conv(x, w, b, pad, dil):
        y = jax.lax.conv_general_dilated(
            x, w, window_strides=(1, 1), padding=[(pad, pad), (pad, pad)],
            rhs_dilation=(dil, dil), dimension_numbers=("NCHW", "OIHW", "NCHW"))
        return jnp.maximum(y + b[None, :, None, None], 0.0)

    x = conv(x, wc1, bc1, 1, 1)
    x = conv(x, wc2, bc2, 1, 1)
    x = conv(x, wc3, bc3, 1, 2)
    x = x.reshape(x.shape[0], -1)          # torch NCHW flatten
    h = jnp.maximum(x @ wf1 + bf1, 0.0)
    h = jnp.maximum(h @ wf2 + bf2, 0.0)
    h = jnp.maximum(h @ wf3 + bf3, 0.0)
    return h @ wf4 + bf4


# ---------------------------------- main --------------------------------------

if __name__ == "__main__":
    key = jax.random.PRNGKey(0)
    k_x, k_p = jax.random.split(key)

    # DQNNetwork fixes map_size=(12, 7), map_channels=4; batch=2 for the demo.
    x = jax.random.normal(k_x, (2, C_IN, MAP_H, MAP_W), dtype=jnp.float32)
    raw_params = init_raw_params(k_p)
    params = prepare_params(raw_params)    # one-time weight re-layout (not in the hot path)

    q_values = jax.jit(dqn_forward)(x, params)
    q_values = jax.block_until_ready(q_values)
    assert q_values.shape == (2, N_ACT), q_values.shape

    ref = jax.block_until_ready(reference_forward(x, raw_params))
    assert jnp.allclose(q_values, ref, atol=1e-4, rtol=1e-4), (
        float(jnp.max(jnp.abs(q_values - ref))))

    print("KERNEL_OK")
</pallas_src>

<mosaic_0001>
module attributes {stable_mosaic.version = 11 : i64} {
  func.func @_dqn_kernel(%arg0: memref<24x28xf32, #tpu.memory_space<vmem>>, %arg1: memref<180x80xf32, #tpu.memory_space<vmem>>, %arg2: memref<1x80xf32, #tpu.memory_space<vmem>>, %arg3: memref<336x160xf32, #tpu.memory_space<vmem>>, %arg4: memref<1x160xf32, #tpu.memory_space<vmem>>, %arg5: memref<672x128xf32, #tpu.memory_space<vmem>>, %arg6: memref<1x128xf32, #tpu.memory_space<vmem>>, %arg7: memref<1024x128xf32, #tpu.memory_space<vmem>>, %arg8: memref<1x128xf32, #tpu.memory_space<vmem>>, %arg9: memref<128x128xf32, #tpu.memory_space<vmem>>, %arg10: memref<1x128xf32, #tpu.memory_space<vmem>>, %arg11: memref<128x128xf32, #tpu.memory_space<vmem>>, %arg12: memref<1x128xf32, #tpu.memory_space<vmem>>, %arg13: memref<128x128xf32, #tpu.memory_space<vmem>>, %arg14: memref<1x128xf32, #tpu.memory_space<vmem>>, %arg15: memref<2x128xf32, #tpu.memory_space<vmem>>, %arg16: memref<28x36xf32, #tpu.memory_space<vmem>>, %arg17: memref<24x112xf32, #tpu.memory_space<vmem>>, %arg18: memref<24x224xf32, #tpu.memory_space<vmem>>, %arg19: memref<2x1024xf32, #tpu.memory_space<vmem>>) attributes {dimension_semantics = [], scalar_prefetch = 0 : i64, scratch_operands = 4 : i64, tpu.core_type = #tpu.core_type<tc>} {
    %cst = arith.constant 0.000000e+00 : f32
    %0 = vector.broadcast %cst : f32 to vector<28x36xf32>
    %c0 = arith.constant 0 : index
    %c0_0 = arith.constant 0 : index
    %1 = vector.load %arg16[%c0, %c0_0] : memref<28x36xf32, #tpu.memory_space<vmem>>, vector<28x36xf32>
    tpu.vector_store %arg16[%c0, %c0_0], %0 {strides = array<i32>} : memref<28x36xf32, #tpu.memory_space<vmem>>, vector<28x36xf32>,
    %cst_1 = arith.constant 0.000000e+00 : f32
    %2 = vector.broadcast %cst_1 : f32 to vector<24x112xf32>
    %c0_2 = arith.constant 0 : index
    %c0_3 = arith.constant 0 : index
    %3 = vector.load %arg17[%c0_2, %c0_3] : memref<24x112xf32, #tpu.memory_space<vmem>>, vector<24x112xf32>
    tpu.vector_store %arg17[%c0_2, %c0_3], %2 {strides = array<i32>} : memref<24x112xf32, #tpu.memory_space<vmem>>, vector<24x112xf32>,
    %cst_4 = arith.constant 0.000000e+00 : f32
    %4 = vector.broadcast %cst_4 : f32 to vector<24x224xf32>
    %c0_5 = arith.constant 0 : index
    %c0_6 = arith.constant 0 : index
    %5 = vector.load %arg18[%c0_5, %c0_6] : memref<24x224xf32, #tpu.memory_space<vmem>>, vector<24x224xf32>
    tpu.vector_store %arg18[%c0_5, %c0_6], %4 {strides = array<i32>} : memref<24x224xf32, #tpu.memory_space<vmem>>, vector<24x224xf32>,
    %c0_7 = arith.constant 0 : index
    %c0_8 = arith.constant 0 : index
    %6 = vector.load %arg0[%c0_7, %c0_8] : memref<24x28xf32, #tpu.memory_space<vmem>>, vector<12x28xf32>
    %c1 = arith.constant 1 : index
    %c4 = arith.constant 4 : index
    %7 = vector.load %arg16[%c1, %c4] : memref<28x36xf32, #tpu.memory_space<vmem>>, vector<12x28xf32>
    tpu.vector_store %arg16[%c1, %c4], %6 {strides = array<i32>} : memref<28x36xf32, #tpu.memory_space<vmem>>, vector<12x28xf32>,
    %c12 = arith.constant 12 : index
    %c0_9 = arith.constant 0 : index
    %8 = vector.load %arg0[%c12, %c0_9] : memref<24x28xf32, #tpu.memory_space<vmem>>, vector<12x28xf32>
    %c15 = arith.constant 15 : index
    %c4_10 = arith.constant 4 : index
    %9 = vector.load %arg16[%c15, %c4_10] : memref<28x36xf32, #tpu.memory_space<vmem>>, vector<12x28xf32>
    tpu.vector_store %arg16[%c15, %c4_10], %8 {strides = array<i32>} : memref<28x36xf32, #tpu.memory_space<vmem>>, vector<12x28xf32>,
    %c0_11 = arith.constant 0 : index
    %c0_12 = arith.constant 0 : index
    %10 = vector.load %arg16[%c0_11, %c0_12] : memref<28x36xf32, #tpu.memory_space<vmem>>, vector<24x36xf32>
    %c0_13 = arith.constant 0 : index
    %c0_14 = arith.constant 0 : index
    %11 = vector.load %arg1[%c0_13, %c0_14] : memref<180x80xf32, #tpu.memory_space<vmem>>, vector<36x80xf32>
    %cst_15 = arith.constant dense<0.000000e+00> : vector<24x80xf32>
    %12 = tpu.matmul %10, %11, %cst_15 {dimension_numbers = #tpu.dot_dimension_numbers<[1], [0], [0], [1], [0, 0, 1, 1], [], []>} : vector<24x36xf32>, vector<36x80xf32>, vector<24x80xf32> -> vector<24x80xf32>
    %c1_16 = arith.constant 1 : index
    %c0_17 = arith.constant 0 : index
    %13 = vector.load %arg16[%c1_16, %c0_17] : memref<28x36xf32, #tpu.memory_space<vmem>>, vector<24x36xf32>
    %c36 = arith.constant 36 : index
    %c0_18 = arith.constant 0 : index
    %14 = vector.load %arg1[%c36, %c0_18] : memref<180x80xf32, #tpu.memory_space<vmem>>, vector<36x80xf32>
    %cst_19 = arith.constant dense<0.000000e+00> : vector<24x80xf32>
    %15 = tpu.matmul %13, %14, %cst_19 {dimension_numbers = #tpu.dot_dimension_numbers<[1], [0], [0], [1], [0, 0, 1, 1], [], []>} : vector<24x36xf32>, vector<36x80xf32>, vector<24x80xf32> -> vector<24x80xf32>
    %16 = arith.addf %12, %15 : vector<24x80xf32>
    %c2 = arith.constant 2 : index
    %c0_20 = arith.constant 0 : index
    %17 = vector.load %arg16[%c2, %c0_20] : memref<28x36xf32, #tpu.memory_space<vmem>>, vector<24x36xf32>
    %c72 = arith.constant 72 : index
    %c0_21 = arith.constant 0 : index
    %18 = vector.load %arg1[%c72, %c0_21] : memref<180x80xf32, #tpu.memory_space<vmem>>, vector<36x80xf32>
    %cst_22 = arith.constant dense<0.000000e+00> : vector<24x80xf32>
    %19 = tpu.matmul %17, %18, %cst_22 {dimension_numbers = #tpu.dot_dimension_numbers<[1], [0], [0], [1], [0, 0, 1, 1], [], []>} : vector<24x36xf32>, vector<36x80xf32>, vector<24x80xf32> -> vector<24x80xf32>
    %20 = arith.addf %16, %19 : vector<24x80xf32>
    %c3 = arith.constant 3 : index
    %c0_23 = arith.constant 0 : index
    %21 = vector.load %arg16[%c3, %c0_23] : memref<28x36xf32, #tpu.memory_space<vmem>>, vector<24x36xf32>
    %c108 = arith.constant 108 : index
    %c0_24 = arith.constant 0 : index
    %22 = vector.load %arg1[%c108, %c0_24] : memref<180x80xf32, #tpu.memory_space<vmem>>, vector<36x80xf32>
    %cst_25 = arith.constant dense<0.000000e+00> : vector<24x80xf32>
    %23 = tpu.matmul %21, %22, %cst_25 {dimension_numbers = #tpu.dot_dimension_numbers<[1], [0], [0], [1], [0, 0, 1, 1], [], []>} : vector<24x36xf32>, vector<36x80xf32>, vector<24x80xf32> -> vector<24x80xf32>
    %24 = arith.addf %20, %23 : vector<24x80xf32>
    %c4_26 = arith.constant 4 : index
    %c0_27 = arith.constant 0 : index
    %25 = vector.load %arg16[%c4_26, %c0_27] : memref<28x36xf32, #tpu.memory_space<vmem>>, vector<24x36xf32>
    %c144 = arith.constant 144 : index
    %c0_28 = arith.constant 0 : index
    %26 = vector.load %arg1[%c144, %c0_28] : memref<180x80xf32, #tpu.memory_space<vmem>>, vector<36x80xf32>
    %cst_29 = arith.constant dense<0.000000e+00> : vector<24x80xf32>
    %27 = tpu.matmul %25, %26, %cst_29 {dimension_numbers = #tpu.dot_dimension_numbers<[1], [0], [0], [1], [0, 0, 1, 1], [], []>} : vector<24x36xf32>, vector<36x80xf32>, vector<24x80xf32> -> vector<24x80xf32>
    %28 = arith.addf %24, %27 : vector<24x80xf32>
    %c0_30 = arith.constant 0 : index
    %c0_31 = arith.constant 0 : index
    %29 = vector.load %arg2[%c0_30, %c0_31] : memref<1x80xf32, #tpu.memory_space<vmem>>, vector<1x80xf32>
    %30 = vector.broadcast %29 : vector<1x80xf32> to vector<24x80xf32>
    %31 = arith.addf %28, %30 : vector<24x80xf32>
    %cst_32 = arith.constant 0.000000e+00 : f32
    %32 = vector.broadcast %cst_32 : f32 to vector<24x80xf32>
    %33 = arith.maximumf %31, %32 : vector<24x80xf32>
    %34 = vector.extract_strided_slice %33 {offsets = [0, 0], sizes = [10, 80], strides = [1, 1]} : vector<24x80xf32> to vector<10x80xf32>
    %c1_33 = arith.constant 1 : index
    %c16 = arith.constant 16 : index
    %35 = vector.load %arg17[%c1_33, %c16] : memref<24x112xf32, #tpu.memory_space<vmem>>, vector<10x80xf32>
    tpu.vector_store %arg17[%c1_33, %c16], %34 {strides = array<i32>} : memref<24x112xf32, #tpu.memory_space<vmem>>, vector<10x80xf32>,
    %36 = vector.extract_strided_slice %33 {offsets = [14, 0], sizes = [10, 80], strides = [1, 1]} : vector<24x80xf32> to vector<10x80xf32>
    %c13 = arith.constant 13 : index
    %c16_34 = arith.constant 16 : index
    %37 = vector.load %arg17[%c13, %c16_34] : memref<24x112xf32, #tpu.memory_space<vmem>>, vector<10x80xf32>
    tpu.vector_store %arg17[%c13, %c16_34], %36 {strides = array<i32>} : memref<24x112xf32, #tpu.memory_space<vmem>>, vector<10x80xf32>,
    %c0_35 = arith.constant 0 : index
    %c0_36 = arith.constant 0 : index
    %38 = vector.load %arg17[%c0_35, %c0_36] : memref<24x112xf32, #tpu.memory_space<vmem>>, vector<22x112xf32>
    %c0_37 = arith.constant 0 : index
    %c0_38 = arith.constant 0 : index
    %39 = vector.load %arg3[%c0_37, %c0_38] : memref<336x160xf32, #tpu.memory_space<vmem>>, vector<112x160xf32>
    %cst_39 = arith.constant dense<0.000000e+00> : vector<22x160xf32>
    %40 = tpu.matmul %38, %39, %cst_39 {dimension_numbers = #tpu.dot_dimension_numbers<[1], [0], [0], [1], [0, 0, 1, 1], [], []>} : vector<22x112xf32>, vector<112x160xf32>, vector<22x160xf32> -> vector<22x160xf32>
    %c1_40 = arith.constant 1 : index
    %c0_41 = arith.constant 0 : index
    %41 = vector.load %arg17[%c1_40, %c0_41] : memref<24x112xf32, #tpu.memory_space<vmem>>, vector<22x112xf32>
    %c112 = arith.constant 112 : index
    %c0_42 = arith.constant 0 : index
    %42 = vector.load %arg3[%c112, %c0_42] : memref<336x160xf32, #tpu.memory_space<vmem>>, vector<112x160xf32>
    %cst_43 = arith.constant dense<0.000000e+00> : vector<22x160xf32>
    %43 = tpu.matmul %41, %42, %cst_43 {dimension_numbers = #tpu.dot_dimension_numbers<[1], [0], [0], [1], [0, 0, 1, 1], [], []>} : vector<22x112xf32>, vector<112x160xf32>, vector<22x160xf32> -> vector<22x160xf32>
    %44 = arith.addf %40, %43 : vector<22x160xf32>
    %c2_44 = arith.constant 2 : index
    %c0_45 = arith.constant 0 : index
    %45 = vector.load %arg17[%c2_44, %c0_45] : memref<24x112xf32, #tpu.memory_space<vmem>>, vector<22x112xf32>
    %c224 = arith.constant 224 : index
    %c0_46 = arith.constant 0 : index
    %46 = vector.load %arg3[%c224, %c0_46] : memref<336x160xf32, #tpu.memory_space<vmem>>, vector<112x160xf32>
    %cst_47 = arith.constant dense<0.000000e+00> : vector<22x160xf32>
    %47 = tpu.matmul %45, %46, %cst_47 {dimension_numbers = #tpu.dot_dimension_numbers<[1], [0], [0], [1], [0, 0, 1, 1], [], []>} : vector<22x112xf32>, vector<112x160xf32>, vector<22x160xf32> -> vector<22x160xf32>
    %48 = arith.addf %44, %47 : vector<22x160xf32>
    %c0_48 = arith.constant 0 : index
    %c0_49 = arith.constant 0 : index
    %49 = vector.load %arg4[%c0_48, %c0_49] : memref<1x160xf32, #tpu.memory_space<vmem>>, vector<1x160xf32>
    %50 = vector.broadcast %49 : vector<1x160xf32> to vector<22x160xf32>
    %51 = arith.addf %48, %50 : vector<22x160xf32>
    %cst_50 = arith.constant 0.000000e+00 : f32
    %52 = vector.broadcast %cst_50 : f32 to vector<22x160xf32>
    %53 = arith.maximumf %51, %52 : vector<22x160xf32>
    %54 = vector.extract_strided_slice %53 {offsets = [0, 0], sizes = [10, 160], strides = [1, 1]} : vector<22x160xf32> to vector<10x160xf32>
    %c1_51 = arith.constant 1 : index
    %c32 = arith.constant 32 : index
    %55 = vector.load %arg18[%c1_51, %c32] : memref<24x224xf32, #tpu.memory_space<vmem>>, vector<10x160xf32>
    tpu.vector_store %arg18[%c1_51, %c32], %54 {strides = array<i32>} : memref<24x224xf32, #tpu.memory_space<vmem>>, vector<10x160xf32>,
    %56 = vector.extract_strided_slice %53 {offsets = [12, 0], sizes = [10, 160], strides = [1, 1]} : vector<22x160xf32> to vector<10x160xf32>
    %c13_52 = arith.constant 13 : index
    %c32_53 = arith.constant 32 : index
    %57 = vector.load %arg18[%c13_52, %c32_53] : memref<24x224xf32, #tpu.memory_space<vmem>>, vector<10x160xf32>
    tpu.vector_store %arg18[%c13_52, %c32_53], %56 {strides = array<i32>} : memref<24x224xf32, #tpu.memory_space<vmem>>, vector<10x160xf32>,
    %c0_54 = arith.constant 0 : index
    %c0_55 = arith.constant 0 : index
    %58 = vector.load %arg18[%c0_54, %c0_55] : memref<24x224xf32, #tpu.memory_space<vmem>>, vector<20x224xf32>
    %c0_56 = arith.constant 0 : index
    %c0_57 = arith.constant 0 : index
    %59 = vector.load %arg5[%c0_56, %c0_57] : memref<672x128xf32, #tpu.memory_space<vmem>>, vector<224x128xf32>
    %cst_58 = arith.constant dense<0.000000e+00> : vector<20x128xf32>
    %60 = tpu.matmul %58, %59, %cst_58 {dimension_numbers = #tpu.dot_dimension_numbers<[1], [0], [0], [1], [0, 0, 1, 1], [], []>} : vector<20x224xf32>, vector<224x128xf32>, vector<20x128xf32> -> vector<20x128xf32>
    %c2_59 = arith.constant 2 : index
    %c0_60 = arith.constant 0 : index
    %61 = vector.load %arg18[%c2_59, %c0_60] : memref<24x224xf32, #tpu.memory_space<vmem>>, vector<20x224xf32>
    %c224_61 = arith.constant 224 : index
    %c0_62 = arith.constant 0 : index
    %62 = vector.load %arg5[%c224_61, %c0_62] : memref<672x128xf32, #tpu.memory_space<vmem>>, vector<224x128xf32>
    %cst_63 = arith.constant dense<0.000000e+00> : vector<20x128xf32>
    %63 = tpu.matmul %61, %62, %cst_63 {dimension_numbers = #tpu.dot_dimension_numbers<[1], [0], [0], [1], [0, 0, 1, 1], [], []>} : vector<20x224xf32>, vector<224x128xf32>, vector<20x128xf32> -> vector<20x128xf32>
    %64 = arith.addf %60, %63 : vector<20x128xf32>
    %c4_64 = arith.constant 4 : index
    %c0_65 = arith.constant 0 : index
    %65 = vector.load %arg18[%c4_64, %c0_65] : memref<24x224xf32, #tpu.memory_space<vmem>>, vector<20x224xf32>
    %c448 = arith.constant 448 : index
    %c0_66 = arith.constant 0 : index
    %66 = vector.load %arg5[%c448, %c0_66] : memref<672x128xf32, #tpu.memory_space<vmem>>, vector<224x128xf32>
    %cst_67 = arith.constant dense<0.000000e+00> : vector<20x128xf32>
    %67 = tpu.matmul %65, %66, %cst_67 {dimension_numbers = #tpu.dot_dimension_numbers<[1], [0], [0], [1], [0, 0, 1, 1], [], []>} : vector<20x224xf32>, vector<224x128xf32>, vector<20x128xf32> -> vector<20x128xf32>
    %68 = arith.addf %64, %67 : vector<20x128xf32>
    %c0_68 = arith.constant 0 : index
    %c0_69 = arith.constant 0 : index
    %69 = vector.load %arg6[%c0_68, %c0_69] : memref<1x128xf32, #tpu.memory_space<vmem>>, vector<1x128xf32>
    %70 = vector.broadcast %69 : vector<1x128xf32> to vector<20x128xf32>
    %71 = arith.addf %68, %70 : vector<20x128xf32>
    %cst_70 = arith.constant 0.000000e+00 : f32
    %72 = vector.broadcast %cst_70 : f32 to vector<20x128xf32>
    %73 = arith.maximumf %71, %72 : vector<20x128xf32>
    %74 = vector.extract_strided_slice %73 {offsets = [0, 0], sizes = [1, 128], strides = [1, 1]} : vector<20x128xf32> to vector<1x128xf32>
    %c0_71 = arith.constant 0 : index
    %c0_72 = arith.constant 0 : index
    %75 = vector.load %arg19[%c0_71, %c0_72] : memref<2x1024xf32, #tpu.memory_space<vmem>>, vector<1x128xf32>
    tpu.vector_store %arg19[%c0_71, %c0_72], %74 {strides = array<i32>} : memref<2x1024xf32, #tpu.memory_space<vmem>>, vector<1x128xf32>,
    %76 = vector.extract_strided_slice %73 {offsets = [1, 0], sizes = [1, 128], strides = [1, 1]} : vector<20x128xf32> to vector<1x128xf32>
    %c0_73 = arith.constant 0 : index
    %c128 = arith.constant 128 : index
    %77 = vector.load %arg19[%c0_73, %c128] : memref<2x1024xf32, #tpu.memory_space<vmem>>, vector<1x128xf32>
    tpu.vector_store %arg19[%c0_73, %c128], %76 {strides = array<i32>} : memref<2x1024xf32, #tpu.memory_space<vmem>>, vector<1x128xf32>,
    %78 = vector.extract_strided_slice %73 {offsets = [2, 0], sizes = [1, 128], strides = [1, 1]} : vector<20x128xf32> to vector<1x128xf32>
    %c0_74 = arith.constant 0 : index
    %c256 = arith.constant 256 : index
    %79 = vector.load %arg19[%c0_74, %c256] : memref<2x1024xf32, #tpu.memory_space<vmem>>, vector<1x128xf32>
    tpu.vector_store %arg19[%c0_74, %c256], %78 {strides = array<i32>} : memref<2x1024xf32, #tpu.memory_space<vmem>>, vector<1x128xf32>,
    %80 = vector.extract_strided_slice %73 {offsets = [3, 0], sizes = [1, 128], strides = [1, 1]} : vector<20x128xf32> to vector<1x128xf32>
    %c0_75 = arith.constant 0 : index
    %c384 = arith.constant 384 : index
    %81 = vector.load %arg19[%c0_75, %c384] : memref<2x1024xf32, #tpu.memory_space<vmem>>, vector<1x128xf32>
    tpu.vector_store %arg19[%c0_75, %c384], %80 {strides = array<i32>} : memref<2x1024xf32, #tpu.memory_space<vmem>>, vector<1x128xf32>,
    %82 = vector.extract_strided_slice %73 {offsets = [4, 0], sizes = [1, 128], strides = [1, 1]} : vector<20x128xf32> to vector<1x128xf32>
    %c0_76 = arith.constant 0 : index
    %c512 = arith.constant 512 : index
    %83 = vector.load %arg19[%c0_76, %c512] : memref<2x1024xf32, #tpu.memory_space<vmem>>, vector<1x128xf32>
    tpu.vector_store %arg19[%c0_76, %c512], %82 {strides = array<i32>} : memref<2x1024xf32, #tpu.memory_space<vmem>>, vector<1x128xf32>,
    %84 = vector.extract_strided_slice %73 {offsets = [5, 0], sizes = [1, 128], strides = [1, 1]} : vector<20x128xf32> to vector<1x128xf32>
    %c0_77 = arith.constant 0 : index
    %c640 = arith.constant 640 : index
    %85 = vector.load %arg19[%c0_77, %c640] : memref<2x1024xf32, #tpu.memory_space<vmem>>, vector<1x128xf32>
    tpu.vector_store %arg19[%c0_77, %c640], %84 {strides = array<i32>} : memref<2x1024xf32, #tpu.memory_space<vmem>>, vector<1x128xf32>,
    %86 = vector.extract_strided_slice %73 {offsets = [6, 0], sizes = [1, 128], strides = [1, 1]} : vector<20x128xf32> to vector<1x128xf32>
    %c0_78 = arith.constant 0 : index
    %c768 = arith.constant 768 : index
    %87 = vector.load %arg19[%c0_78, %c768] : memref<2x1024xf32, #tpu.memory_space<vmem>>, vector<1x128xf32>
    tpu.vector_store %arg19[%c0_78, %c768], %86 {strides = array<i32>} : memref<2x1024xf32, #tpu.memory_space<vmem>>, vector<1x128xf32>,
    %88 = vector.extract_strided_slice %73 {offsets = [7, 0], sizes = [1, 128], strides = [1, 1]} : vector<20x128xf32> to vector<1x128xf32>
    %c0_79 = arith.constant 0 : index
    %c896 = arith.constant 896 : index
    %89 = vector.load %arg19[%c0_79, %c896] : memref<2x1024xf32, #tpu.memory_space<vmem>>, vector<1x128xf32>
    tpu.vector_store %arg19[%c0_79, %c896], %88 {strides = array<i32>} : memref<2x1024xf32, #tpu.memory_space<vmem>>, vector<1x128xf32>,
    %90 = vector.extract_strided_slice %73 {offsets = [12, 0], sizes = [1, 128], strides = [1, 1]} : vector<20x128xf32> to vector<1x128xf32>
    %c1_80 = arith.constant 1 : index
    %c0_81 = arith.constant 0 : index
    %91 = vector.load %arg19[%c1_80, %c0_81] : memref<2x1024xf32, #tpu.memory_space<vmem>>, vector<1x128xf32>
    tpu.vector_store %arg19[%c1_80, %c0_81], %90 {strides = array<i32>} : memref<2x1024xf32, #tpu.memory_space<vmem>>, vector<1x128xf32>,
    %92 = vector.extract_strided_slice %73 {offsets = [13, 0], sizes = [1, 128], strides = [1, 1]} : vector<20x128xf32> to vector<1x128xf32>
    %c1_82 = arith.constant 1 : index
    %c128_83 = arith.constant 128 : index
    %93 = vector.load %arg19[%c1_82, %c128_83] : memref<2x1024xf32, #tpu.memory_space<vmem>>, vector<1x128xf32>
    tpu.vector_store %arg19[%c1_82, %c128_83], %92 {strides = array<i32>} : memref<2x1024xf32, #tpu.memory_space<vmem>>, vector<1x128xf32>,
    %94 = vector.extract_strided_slice %73 {offsets = [14, 0], sizes = [1, 128], strides = [1, 1]} : vector<20x128xf32> to vector<1x128xf32>
    %c1_84 = arith.constant 1 : index
    %c256_85 = arith.constant 256 : index
    %95 = vector.load %arg19[%c1_84, %c256_85] : memref<2x1024xf32, #tpu.memory_space<vmem>>, vector<1x128xf32>
    tpu.vector_store %arg19[%c1_84, %c256_85], %94 {strides = array<i32>} : memref<2x1024xf32, #tpu.memory_space<vmem>>, vector<1x128xf32>,
    %96 = vector.extract_strided_slice %73 {offsets = [15, 0], sizes = [1, 128], strides = [1, 1]} : vector<20x128xf32> to vector<1x128xf32>
    %c1_86 = arith.constant 1 : index
    %c384_87 = arith.constant 384 : index
    %97 = vector.load %arg19[%c1_86, %c384_87] : memref<2x1024xf32, #tpu.memory_space<vmem>>, vector<1x128xf32>
    tpu.vector_store %arg19[%c1_86, %c384_87], %96 {strides = array<i32>} : memref<2x1024xf32, #tpu.memory_space<vmem>>, vector<1x128xf32>,
    %98 = vector.extract_strided_slice %73 {offsets = [16, 0], sizes = [1, 128], strides = [1, 1]} : vector<20x128xf32> to vector<1x128xf32>
    %c1_88 = arith.constant 1 : index
    %c512_89 = arith.constant 512 : index
    %99 = vector.load %arg19[%c1_88, %c512_89] : memref<2x1024xf32, #tpu.memory_space<vmem>>, vector<1x128xf32>
    tpu.vector_store %arg19[%c1_88, %c512_89], %98 {strides = array<i32>} : memref<2x1024xf32, #tpu.memory_space<vmem>>, vector<1x128xf32>,
    %100 = vector.extract_strided_slice %73 {offsets = [17, 0], sizes = [1, 128], strides = [1, 1]} : vector<20x128xf32> to vector<1x128xf32>
    %c1_90 = arith.constant 1 : index
    %c640_91 = arith.constant 640 : index
    %101 = vector.load %arg19[%c1_90, %c640_91] : memref<2x1024xf32, #tpu.memory_space<vmem>>, vector<1x128xf32>
    tpu.vector_store %arg19[%c1_90, %c640_91], %100 {strides = array<i32>} : memref<2x1024xf32, #tpu.memory_space<vmem>>, vector<1x128xf32>,
    %102 = vector.extract_strided_slice %73 {offsets = [18, 0], sizes = [1, 128], strides = [1, 1]} : vector<20x128xf32> to vector<1x128xf32>
    %c1_92 = arith.constant 1 : index
    %c768_93 = arith.constant 768 : index
    %103 = vector.load %arg19[%c1_92, %c768_93] : memref<2x1024xf32, #tpu.memory_space<vmem>>, vector<1x128xf32>
    tpu.vector_store %arg19[%c1_92, %c768_93], %102 {strides = array<i32>} : memref<2x1024xf32, #tpu.memory_space<vmem>>, vector<1x128xf32>,
    %104 = vector.extract_strided_slice %73 {offsets = [19, 0], sizes = [1, 128], strides = [1, 1]} : vector<20x128xf32> to vector<1x128xf32>
    %c1_94 = arith.constant 1 : index
    %c896_95 = arith.constant 896 : index
    %105 = vector.load %arg19[%c1_94, %c896_95] : memref<2x1024xf32, #tpu.memory_space<vmem>>, vector<1x128xf32>
    tpu.vector_store %arg19[%c1_94, %c896_95], %104 {strides = array<i32>} : memref<2x1024xf32, #tpu.memory_space<vmem>>, vector<1x128xf32>,
    %c0_96 = arith.constant 0 : index
    %c0_97 = arith.constant 0 : index
    %106 = vector.load %arg19[%c0_96, %c0_97] : memref<2x1024xf32, #tpu.memory_space<vmem>>, vector<2x1024xf32>
    %c0_98 = arith.constant 0 : index
    %c0_99 = arith.constant 0 : index
    %107 = vector.load %arg7[%c0_98, %c0_99] : memref<1024x128xf32, #tpu.memory_space<vmem>>, vector<1024x128xf32>
    %cst_100 = arith.constant dense<0.000000e+00> : vector<2x128xf32>
    %108 = tpu.matmul %106, %107, %cst_100 {dimension_numbers = #tpu.dot_dimension_numbers<[1], [0], [0], [1], [0, 0, 1, 1], [], []>} : vector<2x1024xf32>, vector<1024x128xf32>, vector<2x128xf32> -> vector<2x128xf32>
    %c0_101 = arith.constant 0 : index
    %c0_102 = arith.constant 0 : index
    %109 = vector.load %arg8[%c0_101, %c0_102] : memref<1x128xf32, #tpu.memory_space<vmem>>, vector<1x128xf32>
    %110 = vector.broadcast %109 : vector<1x128xf32> to vector<2x128xf32>
    %111 = arith.addf %108, %110 : vector<2x128xf32>
    %cst_103 = arith.constant 0.000000e+00 : f32
    %112 = vector.broadcast %cst_103 : f32 to vector<2x128xf32>
    %113 = arith.maximumf %111, %112 : vector<2x128xf32>
    %c0_104 = arith.constant 0 : index
    %c0_105 = arith.constant 0 : index
    %114 = vector.load %arg9[%c0_104, %c0_105] : memref<128x128xf32, #tpu.memory_space<vmem>>, vector<128x128xf32>
    %cst_106 = arith.constant dense<0.000000e+00> : vector<2x128xf32>
    %115 = tpu.matmul %113, %114, %cst_106 {dimension_numbers = #tpu.dot_dimension_numbers<[1], [0], [0], [1], [0, 0, 1, 1], [], []>} : vector<2x128xf32>, vector<128x128xf32>, vector<2x128xf32> -> vector<2x128xf32>
    %c0_107 = arith.constant 0 : index
    %c0_108 = arith.constant 0 : index
    %116 = vector.load %arg10[%c0_107, %c0_108] : memref<1x128xf32, #tpu.memory_space<vmem>>, vector<1x128xf32>
    %117 = vector.broadcast %116 : vector<1x128xf32> to vector<2x128xf32>
    %118 = arith.addf %115, %117 : vector<2x128xf32>
    %cst_109 = arith.constant 0.000000e+00 : f32
    %119 = vector.broadcast %cst_109 : f32 to vector<2x128xf32>
    %120 = arith.maximumf %118, %119 : vector<2x128xf32>
    %c0_110 = arith.constant 0 : index
    %c0_111 = arith.constant 0 : index
    %121 = vector.load %arg11[%c0_110, %c0_111] : memref<128x128xf32, #tpu.memory_space<vmem>>, vector<128x128xf32>
    %cst_112 = arith.constant dense<0.000000e+00> : vector<2x128xf32>
    %122 = tpu.matmul %120, %121, %cst_112 {dimension_numbers = #tpu.dot_dimension_numbers<[1], [0], [0], [1], [0, 0, 1, 1], [], []>} : vector<2x128xf32>, vector<128x128xf32>, vector<2x128xf32> -> vector<2x128xf32>
    %c0_113 = arith.constant 0 : index
    %c0_114 = arith.constant 0 : index
    %123 = vector.load %arg12[%c0_113, %c0_114] : memref<1x128xf32, #tpu.memory_space<vmem>>, vector<1x128xf32>
    %124 = vector.broadcast %123 : vector<1x128xf32> to vector<2x128xf32>
    %125 = arith.addf %122, %124 : vector<2x128xf32>
    %cst_115 = arith.constant 0.000000e+00 : f32
    %126 = vector.broadcast %cst_115 : f32 to vector<2x128xf32>
    %127 = arith.maximumf %125, %126 : vector<2x128xf32>
    %c0_116 = arith.constant 0 : index
    %c0_117 = arith.constant 0 : index
    %128 = vector.load %arg13[%c0_116, %c0_117] : memref<128x128xf32, #tpu.memory_space<vmem>>, vector<128x128xf32>
    %cst_118 = arith.constant dense<0.000000e+00> : vector<2x128xf32>
    %129 = tpu.matmul %127, %128, %cst_118 {dimension_numbers = #tpu.dot_dimension_numbers<[1], [0], [0], [1], [0, 0, 1, 1], [], []>} : vector<2x128xf32>, vector<128x128xf32>, vector<2x128xf32> -> vector<2x128xf32>
    %c0_119 = arith.constant 0 : index
    %c0_120 = arith.constant 0 : index
    %130 = vector.load %arg14[%c0_119, %c0_120] : memref<1x128xf32, #tpu.memory_space<vmem>>, vector<1x128xf32>
    %131 = vector.broadcast %130 : vector<1x128xf32> to vector<2x128xf32>
    %132 = arith.addf %129, %131 : vector<2x128xf32>
    %c0_121 = arith.constant 0 : index
    %c0_122 = arith.constant 0 : index
    %133 = vector.load %arg15[%c0_121, %c0_122] : memref<2x128xf32, #tpu.memory_space<vmem>>, vector<2x128xf32>
    tpu.vector_store %arg15[%c0_121, %c0_122], %132 {strides = array<i32>} : memref<2x128xf32, #tpu.memory_space<vmem>>, vector<2x128xf32>,
    return
  }
}

</mosaic_0001>

<llo_original>
// kernel: dqn_forward.1
$region0: #{dqn_forward.1}
  #allocation0 [shape = 'u32[]', space=smem, size = 0x4, offset = 0x4, fixed_abs, tag = 'smem constant byte address 0x4 - core index']
  #allocation1 [shape = 'u32[144,128]{1,0:T(1,128)}', space=vmem, size = 0x12000, scoped, tag = 'internal scratch']
  #allocation2 [shape = 'f32[28,36]{1,0:T(8,128)}', space=vmem, size = 0x4000, scoped, tag = 'scratch operand']
  #allocation3 [shape = 'f32[24,112]{1,0:T(8,128)}', space=vmem, size = 0x3000, scoped, tag = 'scratch operand']
  #allocation4 [shape = 'f32[24,224]{1,0:T(8,128)}', space=vmem, size = 0x6000, scoped, tag = 'scratch operand']
  #allocation5 [shape = 'f32[2,1024]{1,0:T(2,128)}', space=vmem, size = 0x2000, scoped, tag = 'scratch operand']
  %s0 = inlined_call_operand.vmem [shape: f32[24,28], index: 0, kind: input, shape index: {}]
  %s1 = inlined_call_operand.vmem [shape: f32[180,80], index: 1, kind: input, shape index: {}]
  %s2 = inlined_call_operand.vmem [shape: f32[1,80], index: 2, kind: input, shape index: {}]
  %s3 = inlined_call_operand.vmem [shape: f32[336,160], index: 3, kind: input, shape index: {}]
  %s4 = inlined_call_operand.vmem [shape: f32[1,160], index: 4, kind: input, shape index: {}]
  %s5 = inlined_call_operand.vmem [shape: f32[672,128], index: 5, kind: input, shape index: {}]
  %s6 = inlined_call_operand.vmem [shape: f32[1,128], index: 6, kind: input, shape index: {}]
  %s7 = inlined_call_operand.vmem [shape: f32[1024,128], index: 7, kind: input, shape index: {}]
  %s8 = inlined_call_operand.vmem [shape: f32[1,128], index: 8, kind: input, shape index: {}]
  %s9 = inlined_call_operand.hbm [shape: f32[128,128], index: 9, kind: input, shape index: {}]
  %s10 = inlined_call_operand.vmem [shape: f32[1,128], index: 10, kind: input, shape index: {}]
  %s11 = inlined_call_operand.hbm [shape: f32[128,128], index: 11, kind: input, shape index: {}]
  %s12 = inlined_call_operand.vmem [shape: f32[1,128], index: 12, kind: input, shape index: {}]
  %s13 = inlined_call_operand.hbm [shape: f32[128,128], index: 13, kind: input, shape index: {}]
  %s14 = inlined_call_operand.vmem [shape: f32[1,128], index: 14, kind: input, shape index: {}]
  %s15 = inlined_call_operand.hbm [shape: f32[2,128], index: 15, kind: output, shape index: {}]
  %s16 = sld [smem:[#allocation0]]
  $region82: #{dqn_forward.1} parent=0
    _
  %s18 = ssub.s32 1, %s16
  %s19 = scalar_select 0, %s18, %s16
  $region1: #{dqn_forward.1} parent=0
    #allocation6 [shape = 'u8[65536]{0}', space=vmem, size = 0x10000, scoped, tag = 'input window, operand 9, single buffered']
    #allocation7 [shape = 's32[1]{0}', space=sflag, size = 0x4, scoped, tag = 'scoped memory for dqn_forward.1']
    #allocation8 [shape = 's32[1]{0}', space=sflag, size = 0x4, scoped, tag = 'scoped memory for dqn_forward.1']
    #allocation9 [shape = 'u8[65536]{0}', space=vmem, size = 0x10000, scoped, tag = 'input window, operand 11, single buffered']
    #allocation10 [shape = 's32[1]{0}', space=sflag, size = 0x4, scoped, tag = 'scoped memory for dqn_forward.1']
    #allocation11 [shape = 'u8[65536]{0}', space=vmem, size = 0x10000, scoped, tag = 'input window, operand 13, single buffered']
    #allocation12 [shape = 'u8[1024]{0}', space=vmem, size = 0x400, scoped, tag = 'output window, operand 0, single buffered']
    %20 = vsyncpa [#allocation7], 0
    %21 = vsyncpa [#allocation10], 0
    %22 = vsyncpa [#allocation8], 0
    // Predicated region
    $region2: #{dqn_forward.1} parent=1 // pred_check
      _
    $region3: #{dqn_forward.1} parent=1 // pred_check_branch
      %24 = sbr.rel (0) target = $region5
    $region4: #{dqn_forward.1} parent=1 // pred_region
      _
    $region5: #{dqn_forward.1} parent=1 // pred_fallthru
      _
    // Predicated region
    $region6: #{dqn_forward.1} parent=1 // pred_check
      _
    $region7: #{dqn_forward.1} parent=1 // pred_check_branch
      %26 = sbr.rel (0) target = $region9
    $region8: #{dqn_forward.1} parent=1 // pred_region
      _
    $region9: #{dqn_forward.1} parent=1 // pred_fallthru
      _
    // Predicated region
    $region10: #{dqn_forward.1} parent=1 // pred_check
      _
    $region11: #{dqn_forward.1} parent=1 // pred_check_branch
      %28 = sbr.rel (0) target = $region13
    $region12: #{dqn_forward.1} parent=1 // pred_region
      _
    $region13: #{dqn_forward.1} parent=1 // pred_fallthru
      _
    // Predicated region
    $region14: #{dqn_forward.1} parent=1 // pred_check
      _
    $region15: #{dqn_forward.1} parent=1 // pred_check_branch
      %30 = sbr.rel (0) target = $region17
    $region16: #{dqn_forward.1} parent=1 // pred_region
      _
    $region17: #{dqn_forward.1} parent=1 // pred_fallthru
      _
    // Predicated region
    $region18: #{dqn_forward.1} parent=1 // pred_check
      _
    $region19: #{dqn_forward.1} parent=1 // pred_check_branch
      %32 = sbr.rel (0) target = $region21
    $region20: #{dqn_forward.1} parent=1 // pred_region
      _
    $region21: #{dqn_forward.1} parent=1 // pred_fallthru
      _
    // Predicated region
    $region22: #{dqn_forward.1} parent=1 // pred_check
      _
    $region23: #{dqn_forward.1} parent=1 // pred_check_branch
      %34 = sbr.rel (0) target = $region25
    $region24: #{dqn_forward.1} parent=1 // pred_region
      _
    $region25: #{dqn_forward.1} parent=1 // pred_fallthru
      _
    // Predicated region
    $region26: #{dqn_forward.1} parent=1 // pred_check
      _
    $region27: #{dqn_forward.1} parent=1 // pred_check_branch
      %36 = sbr.rel (0) target = $region29
    $region28: #{dqn_forward.1} parent=1 // pred_region
      _
    $region29: #{dqn_forward.1} parent=1 // pred_fallthru
      _
    // Predicated region
    $region30: #{dqn_forward.1} parent=1 // pred_check
      _
    $region31: #{dqn_forward.1} parent=1 // pred_check_branch
      %38 = sbr.rel (0) target = $region33
    $region32: #{dqn_forward.1} parent=1 // pred_region
      _
    $region33: #{dqn_forward.1} parent=1 // pred_fallthru
      _
    // Predicated region
    $region34: #{dqn_forward.1} parent=1 // pred_check
      _
    $region35: #{dqn_forward.1} parent=1 // pred_check_branch
      %40 = sbr.rel (0) target = $region37
    $region36: #{dqn_forward.1} parent=1 // pred_region
      _
    $region37: #{dqn_forward.1} parent=1 // pred_fallthru
      _
    // Predicated region
    $region38: #{dqn_forward.1} parent=1 // pred_check
      _
    $region39: #{dqn_forward.1} parent=1 // pred_check_branch
      %42 = sbr.rel (0) target = $region41
    $region40: #{dqn_forward.1} parent=1 // pred_region
      %s44 = ssub.s32 2048, 2048
      %45 = vsyncadd [#allocation7], %s44
      %s46 = sshll.u32 [#allocation6], 4
      %s47 = int_to_ptr.vmem [resolvable:$true] %s46
      %52 = dma.hbm_to_vmem [thread:$0]  %s9, 2048, %s47, [#allocation7], 128, 128, 8
    $region41: #{dqn_forward.1} parent=1 // pred_fallthru
      _
    // Predicated region
    $region42: #{dqn_forward.1} parent=1 // pred_check
      _
    $region43: #{dqn_forward.1} parent=1 // pred_check_branch
      %54 = sbr.rel (0) target = $region45
    $region44: #{dqn_forward.1} parent=1 // pred_region
      _
    $region45: #{dqn_forward.1} parent=1 // pred_fallthru
      _
    // Predicated region
    $region46: #{dqn_forward.1} parent=1 // pred_check
      _
    $region47: #{dqn_forward.1} parent=1 // pred_check_branch
      %56 = sbr.rel (0) target = $region49
    $region48: #{dqn_forward.1} parent=1 // pred_region
      %s58 = ssub.s32 2048, 2048
      %59 = vsyncadd [#allocation10], %s58
      %s60 = sshll.u32 [#allocation9], 4
      %s61 = int_to_ptr.vmem [resolvable:$true] %s60
      %66 = dma.hbm_to_vmem [thread:$0]  %s11, 2048, %s61, [#allocation10], 128, 128, 8
    $region49: #{dqn_forward.1} parent=1 // pred_fallthru
      _
    // Predicated region
    $region50: #{dqn_forward.1} parent=1 // pred_check
      _
    $region51: #{dqn_forward.1} parent=1 // pred_check_branch
      %68 = sbr.rel (0) target = $region53
    $region52: #{dqn_forward.1} parent=1 // pred_region
      _
    $region53: #{dqn_forward.1} parent=1 // pred_fallthru
      _
    // Predicated region
    $region54: #{dqn_forward.1} parent=1 // pred_check
      _
    $region55: #{dqn_forward.1} parent=1 // pred_check_branch
      %70 = sbr.rel (0) target = $region57
    $region56: #{dqn_forward.1} parent=1 // pred_region
      %s72 = ssub.s32 2048, 2048
      %73 = vsyncadd [#allocation10], %s72
      %s74 = sshll.u32 [#allocation11], 4
      %s75 = int_to_ptr.vmem [resolvable:$true] %s74
      %80 = dma.hbm_to_vmem [thread:$0]  %s13, 2048, %s75, [#allocation10], 128, 128, 8
    $region57: #{dqn_forward.1} parent=1 // pred_fallthru
      _
    // Predicated region
    $region58: #{dqn_forward.1} parent=1 // pred_check
      _
    $region59: #{dqn_forward.1} parent=1 // pred_check_branch
      %82 = sbr.rel (0) target = $region61
    $region60: #{dqn_forward.1} parent=1 // pred_region
      _
    $region61: #{dqn_forward.1} parent=1 // pred_fallthru
      _
    // Predicated region
    $region62: #{dqn_forward.1} parent=1 // pred_check
      _
    $region63: #{dqn_forward.1} parent=1 // pred_check_branch
      %84 = sbr.rel (0) target = $region65
    $region64: #{dqn_forward.1} parent=1 // pred_region
      %85 = dma.done [#allocation7], 2048
    $region65: #{dqn_forward.1} parent=1 // pred_fallthru
      _
    // Predicated region
    $region66: #{dqn_forward.1} parent=1 // pred_check
      _
    $region67: #{dqn_forward.1} parent=1 // pred_check_branch
      %87 = sbr.rel (0) target = $region69
    $region68: #{dqn_forward.1} parent=1 // pred_region
      %88 = dma.done [#allocation10], 2048
    $region69: #{dqn_forward.1} parent=1 // pred_fallthru
      _
    // Predicated region
    $region70: #{dqn_forward.1} parent=1 // pred_check
      _
    $region71: #{dqn_forward.1} parent=1 // pred_check_branch
      %90 = sbr.rel (0) target = $region73
    $region72: #{dqn_forward.1} parent=1 // pred_region
      %91 = dma.done [#allocation10], 2048
    $region73: #{dqn_forward.1} parent=1 // pred_fallthru
      _
    %vm92 = vcmask 293888
    %93 = vst.msk [vmem:[#allocation2] sm:$0xff] %vm92, 0.0
    %94 = vst.msk [vmem:[#allocation2 + $0x8] sm:$0xff] %vm92, 0.0
    %95 = vst.msk [vmem:[#allocation2 + $0x10] sm:$0xff] %vm92, 0.0
    %vm96 = vcmask 289792
    %97 = vst.msk [vmem:[#allocation2 + $0x18] sm:$0xf] %vm96, 0.0
    %vm98 = vcmask 916480
    %99 = vst.msk [vmem:[#allocation3] sm:$0xff] %vm98, 0.0
    %100 = vst.msk [vmem:[#allocation3 + $0x8] sm:$0xff] %vm98, 0.0
    %101 = vst.msk [vmem:[#allocation3 + $0x10] sm:$0xff] %vm98, 0.0
    %102 = vst [vmem:[#allocation4] sm:$0xff] 0.0
    %vm103 = vcmask 785408
    %104 = vst.msk [vmem:[#allocation4 + $0x8] sm:$0xff] %vm103, 0.0
    %105 = vst [vmem:[#allocation4 + $0x10] sm:$0xff] 0.0
    %106 = vst.msk [vmem:[#allocation4 + $0x18] sm:$0xff] %vm103, 0.0
    %107 = vst [vmem:[#allocation4 + $0x20] sm:$0xff] 0.0
    %108 = vst.msk [vmem:[#allocation4 + $0x28] sm:$0xff] %vm103, 0.0
    %v109 = vld [vmem:[%s0] sm:$0xff]
    %v110 = vld [vmem:[%s0 + $0x8] sm:$0xf]
    %113 = vrot.lane.b32.xlu0 %v109, 4
    %v114 = vpop.permute.xlu0 %113
    %115 = vrot.lane.b32.xlu0 %v110, 4
    %v116 = vpop.permute.xlu0 %115
    %vm119 = vcmask 261152
    %120 = vst.msk [vmem:[#allocation2 + $0x1] sm:$0xff] %vm119, %v114
    %vm121 = vcmask 257056
    %122 = vst.msk [vmem:[#allocation2 + $0x9] sm:$0xf] %vm121, %v116
    %v123 = vld [vmem:[%s0 + $0xc] sm:$0xff]
    %v124 = vld [vmem:[%s0 + $0x14] sm:$0xf]
    %127 = vrot.lane.b32.xlu0 %v123, 4
    %v128 = vpop.permute.xlu0 %127
    %129 = vrot.lane.b32.xlu0 %v124, 4
    %v130 = vpop.permute.xlu0 %129
    %133 = vst.msk [vmem:[#allocation2 + $0xf] sm:$0xff] %vm119, %v128
    %134 = vst.msk [vmem:[#allocation2 + $0x17] sm:$0xf] %vm121, %v130
    %v135 = vld [vmem:[#allocation2] sm:$0xff]
    %v136 = vld [vmem:[#allocation2 + $0x8] sm:$0xff]
    %v137 = vld [vmem:[#allocation2 + $0x10] sm:$0xff]
    %v138 = vld [vmem:[%s1] sm:$0xff]
    %v139 = vld [vmem:[%s1 + $0x8] sm:$0xff]
    %v140 = vld [vmem:[%s1 + $0x10] sm:$0xff]
    %v141 = vld [vmem:[%s1 + $0x18] sm:$0xff]
    %v142 = vld [vmem:[%s1 + $0x20] sm:$0xf]
    %v143 = vld [vmem:[#allocation2 + $0x1] sm:$0xff]
    %v144 = vld [vmem:[#allocation2 + $0x9] sm:$0xff]
    %v145 = vld [vmem:[#allocation2 + $0x11] sm:$0xff]
    %v146 = vld [vmem:[%s1 + $0x24] sm:$0xff]
    %v147 = vld [vmem:[%s1 + $0x2c] sm:$0xff]
    %v148 = vld [vmem:[%s1 + $0x34] sm:$0xff]
    %v149 = vld [vmem:[%s1 + $0x3c] sm:$0xff]
    %v150 = vld [vmem:[%s1 + $0x44] sm:$0xf]
    %v152 = vsel %vm92, %v143, 0
    %v155 = vsel %vm92, %v144, 0
    %v158 = vsel %vm92, %v145, 0
    %vm160 = vcmask 1043456
    %v162 = vsel %vm160, %v150, 0
    %164 = vmatprep.subr.mxu0 0.0
    %165 = vmatpush1.msra.mxu0 %v146
    %166 = vmatprep.subr.mxu0 0.0
    %167 = vmatpush1.msra.mxu0 %v147
    %168 = vmatprep.subr.mxu0 0.0
    %169 = vmatpush1.msra.mxu0 %v148
    %170 = vmatprep.subr.mxu0 0.0
    %171 = vmatpush1.msra.mxu0 %v149
    %172 = vmatprep.subr.mxu0 0.0
    %173 = vmatpush1.msra.mxu0 %v162
    %174 = vmatprep.subr.mxu0 0.0
    %175 = vmatpush1.msra.mxu0 0.0
    %176 = vmatprep.subr.mxu0 0.0
    %177 = vmatpush1.msra.mxu0 0.0
    %178 = vmatprep.subr.mxu0 0.0
    %179 = vmatpush1.msra.mxu0 0.0
    %180 = vmatprep.subr.mxu0 0.0
    %181 = vmatpush1.msra.mxu0 0.0
    %182 = vmatprep.subr.mxu0 0.0
    %183 = vmatpush1.msra.mxu0 0.0
    %184 = vmatprep.subr.mxu0 0.0
    %185 = vmatpush1.msra.mxu0 0.0
    %186 = vmatprep.subr.mxu0 0.0
    %187 = vmatpush1.msra.mxu0 0.0
    %188 = vmatprep.subr.mxu0 0.0
    %189 = vmatpush1.msra.mxu0 0.0
    %190 = vmatprep.subr.mxu0 0.0
    %191 = vmatpush1.msra.mxu0 0.0
    %192 = vmatprep.subr.mxu0 0.0
    %193 = vmatpush1.msra.mxu0 0.0
    %194 = vmatprep.subr.mxu0 0.0
    %195 = vmatpush1.msra.mxu0 0.0
    %196 = vmatprep.subr.mxu0 0.0
    %197 = vmatpush1.msra.mxu0 0.0
    %198 = vmatprep.subr.mxu0 0.0
    %199 = vmatpush1.msra.mxu0 0.0
    %200 = vmatprep.subr.mxu0 0.0
    %201 = vmatpush1.msra.mxu0 0.0
    %202 = vmatprep.subr.mxu0 0.0
    %203 = vmatpush1.msra.mxu0 0.0
    %204 = vmatprep.subr.mxu0 0.0
    %205 = vmatpush1.msra.mxu0 0.0
    %206 = vmatprep.subr.mxu0 0.0
    %207 = vmatpush1.msra.mxu0 0.0
    %208 = vmatprep.subr.mxu0 0.0
    %209 = vmatpush1.msra.mxu0 0.0
    %210 = vmatprep.subr.mxu0 0.0
    %211 = vmatpush1.msra.mxu0 0.0
    %212 = vmatprep.subr.mxu0 0.0
    %213 = vmatpush1.msra.mxu0 0.0
    %214 = vmatprep.subr.mxu0 0.0
    %215 = vmatpush1.msra.mxu0 0.0
    %216 = vmatprep.subr.mxu0 0.0
    %217 = vmatpush1.msra.mxu0 0.0
    %218 = vmatprep.subr.mxu0 0.0
    %219 = vmatpush1.msra.mxu0 0.0
    %220 = vmatprep.subr.mxu0 0.0
    %221 = vmatpush1.msra.mxu0 0.0
    %222 = vmatprep.subr.mxu0 0.0
    %223 = vmatpush1.msra.mxu0 0.0
    %224 = vmatprep.subr.mxu0 0.0
    %225 = vmatpush1.msra.mxu0 0.0
    %226 = vmatprep.subr.mxu0 0.0
    %227 = vmatpush1.msra.mxu0 0.0
    %228 = vmatprep.mubr.f32.mxu0 0.0
    %229 = vmatmul.mubr.f32.gmra.mrb[0].mxu0 %v152
    %v230 = vpop.f32.mrb[0].mxu0
    %v231 = vadd.f32 0.0, %v230
    %v232 = vpop.f32.mrb[0].mxu0
    %233 = vmatprep.mubr.f32.mxu0 0.0
    %234 = vmatmul.mubr.f32.gmra.mrb[0].mxu0 %v155
    %v235 = vpop.f32.mrb[0].mxu0
    %v236 = vadd.f32 0.0, %v235
    %v237 = vpop.f32.mrb[0].mxu0
    %238 = vmatprep.mubr.f32.mxu0 0.0
    %239 = vmatmul.mubr.f32.gmra.mrb[0].mxu0 %v158
    %v240 = vpop.f32.mrb[0].mxu0
    %v241 = vadd.f32 0.0, %v240
    %v242 = vpop.f32.mrb[0].mxu0
    %243 = vdwg.mxu0
    %v245 = vsel %vm92, %v135, 0
    %v248 = vsel %vm92, %v136, 0
    %v251 = vsel %vm92, %v137, 0
    %v254 = vsel %vm160, %v142, 0
    %256 = vmatprep.subr.mxu0 0.0
    %257 = vmatpush1.msra.mxu0 %v138
    %258 = vmatprep.subr.mxu0 0.0
    %259 = vmatpush1.msra.mxu0 %v139
    %260 = vmatprep.subr.mxu0 0.0
    %261 = vmatpush1.msra.mxu0 %v140
    %262 = vmatprep.subr.mxu0 0.0
    %263 = vmatpush1.msra.mxu0 %v141
    %264 = vmatprep.subr.mxu0 0.0
    %265 = vmatpush1.msra.mxu0 %v254
    %266 = vmatprep.subr.mxu0 0.0
    %267 = vmatpush1.msra.mxu0 0.0
    %268 = vmatprep.subr.mxu0 0.0
    %269 = vmatpush1.msra.mxu0 0.0
    %270 = vmatprep.subr.mxu0 0.0
    %271 = vmatpush1.msra.mxu0 0.0
    %272 = vmatprep.subr.mxu0 0.0
    %273 = vmatpush1.msra.mxu0 0.0
    %274 = vmatprep.subr.mxu0 0.0
    %275 = vmatpush1.msra.mxu0 0.0
    %276 = vmatprep.subr.mxu0 0.0
    %277 = vmatpush1.msra.mxu0 0.0
    %278 = vmatprep.subr.mxu0 0.0
    %279 = vmatpush1.msra.mxu0 0.0
    %280 = vmatprep.subr.mxu0 0.0
    %281 = vmatpush1.msra.mxu0 0.0
    %282 = vmatprep.subr.mxu0 0.0
    %283 = vmatpush1.msra.mxu0 0.0
    %284 = vmatprep.subr.mxu0 0.0
    %285 = vmatpush1.msra.mxu0 0.0
    %286 = vmatprep.subr.mxu0 0.0
    %287 = vmatpush1.msra.mxu0 0.0
    %288 = vmatprep.subr.mxu0 0.0
    %289 = vmatpush1.msra.mxu0 0.0
    %290 = vmatprep.subr.mxu0 0.0
    %291 = vmatpush1.msra.mxu0 0.0
    %292 = vmatprep.subr.mxu0 0.0
    %293 = vmatpush1.msra.mxu0 0.0
    %294 = vmatprep.subr.mxu0 0.0
    %295 = vmatpush1.msra.mxu0 0.0
    %296 = vmatprep.subr.mxu0 0.0
    %297 = vmatpush1.msra.mxu0 0.0
    %298 = vmatprep.subr.mxu0 0.0
    %299 = vmatpush1.msra.mxu0 0.0
    %300 = vmatprep.subr.mxu0 0.0
    %301 = vmatpush1.msra.mxu0 0.0
    %302 = vmatprep.subr.mxu0 0.0
    %303 = vmatpush1.msra.mxu0 0.0
    %304 = vmatprep.subr.mxu0 0.0
    %305 = vmatpush1.msra.mxu0 0.0
    %306 = vmatprep.subr.mxu0 0.0
    %307 = vmatpush1.msra.mxu0 0.0
    %308 = vmatprep.subr.mxu0 0.0
    %309 = vmatpush1.msra.mxu0 0.0
    %310 = vmatprep.subr.mxu0 0.0
    %311 = vmatpush1.msra.mxu0 0.0
    %312 = vmatprep.subr.mxu0 0.0
    %313 = vmatpush1.msra.mxu0 0.0
    %314 = vmatprep.subr.mxu0 0.0
    %315 = vmatpush1.msra.mxu0 0.0
    %316 = vmatprep.subr.mxu0 0.0
    %317 = vmatpush1.msra.mxu0 0.0
    %318 = vmatprep.subr.mxu0 0.0
    %319 = vmatpush1.msra.mxu0 0.0
    %320 = vmatprep.mubr.f32.mxu0 0.0
    %321 = vmatmul.mubr.f32.gmra.mrb[0].mxu0 %v245
    %v322 = vpop.f32.mrb[0].mxu0
    %v323 = vadd.f32 %v231, %v322
    %v324 = vpop.f32.mrb[0].mxu0
    %325 = vmatprep.mubr.f32.mxu0 0.0
    %326 = vmatmul.mubr.f32.gmra.mrb[0].mxu0 %v248
    %v327 = vpop.f32.mrb[0].mxu0
    %v328 = vadd.f32 %v236, %v327
    %v329 = vpop.f32.mrb[0].mxu0
    %330 = vmatprep.mubr.f32.mxu0 0.0
    %331 = vmatmul.mubr.f32.gmra.mrb[0].mxu0 %v251
    %v332 = vpop.f32.mrb[0].mxu0
    %v333 = vadd.f32 %v241, %v332
    %v334 = vpop.f32.mrb[0].mxu0
    %335 = vdwg.mxu0
    %v336 = vld [vmem:[#allocation2 + $0x2] sm:$0xff]
    %v337 = vld [vmem:[#allocation2 + $0xa] sm:$0xff]
    %v338 = vld [vmem:[#allocation2 + $0x12] sm:$0xff]
    %v339 = vld [vmem:[%s1 + $0x48] sm:$0xff]
    %v340 = vld [vmem:[%s1 + $0x50] sm:$0xff]
    %v341 = vld [vmem:[%s1 + $0x58] sm:$0xff]
    %v342 = vld [vmem:[%s1 + $0x60] sm:$0xff]
    %v343 = vld [vmem:[%s1 + $0x68] sm:$0xf]
    %v345 = vsel %vm92, %v336, 0
    %v348 = vsel %vm92, %v337, 0
    %v351 = vsel %vm92, %v338, 0
    %v354 = vsel %vm160, %v343, 0
    %356 = vmatprep.subr.mxu0 0.0
    %357 = vmatpush1.msra.mxu0 %v339
    %358 = vmatprep.subr.mxu0 0.0
    %359 = vmatpush1.msra.mxu0 %v340
    %360 = vmatprep.subr.mxu0 0.0
    %361 = vmatpush1.msra.mxu0 %v341
    %362 = vmatprep.subr.mxu0 0.0
    %363 = vmatpush1.msra.mxu0 %v342
    %364 = vmatprep.subr.mxu0 0.0
    %365 = vmatpush1.msra.mxu0 %v354
    %366 = vmatprep.subr.mxu0 0.0
    %367 = vmatpush1.msra.mxu0 0.0
    %368 = vmatprep.subr.mxu0 0.0
    %369 = vmatpush1.msra.mxu0 0.0
    %370 = vmatprep.subr.mxu0 0.0
    %371 = vmatpush1.msra.mxu0 0.0
    %372 = vmatprep.subr.mxu0 0.0
    %373 = vmatpush1.msra.mxu0 0.0
    %374 = vmatprep.subr.mxu0 0.0
    %375 = vmatpush1.msra.mxu0 0.0
    %376 = vmatprep.subr.mxu0 0.0
    %377 = vmatpush1.msra.mxu0 0.0
    %378 = vmatprep.subr.mxu0 0.0
    %379 = vmatpush1.msra.mxu0 0.0
    %380 = vmatprep.subr.mxu0 0.0
    %381 = vmatpush1.msra.mxu0 0.0
    %382 = vmatprep.subr.mxu0 0.0
    %383 = vmatpush1.msra.mxu0 0.0
    %384 = vmatprep.subr.mxu0 0.0
    %385 = vmatpush1.msra.mxu0 0.0
    %386 = vmatprep.subr.mxu0 0.0
    %387 = vmatpush1.msra.mxu0 0.0
    %388 = vmatprep.subr.mxu0 0.0
    %389 = vmatpush1.msra.mxu0 0.0
    %390 = vmatprep.subr.mxu0 0.0
    %391 = vmatpush1.msra.mxu0 0.0
    %392 = vmatprep.subr.mxu0 0.0
    %393 = vmatpush1.msra.mxu0 0.0
    %394 = vmatprep.subr.mxu0 0.0
    %395 = vmatpush1.msra.mxu0 0.0
    %396 = vmatprep.subr.mxu0 0.0
    %397 = vmatpush1.msra.mxu0 0.0
    %398 = vmatprep.subr.mxu0 0.0
    %399 = vmatpush1.msra.mxu0 0.0
    %400 = vmatprep.subr.mxu0 0.0
    %401 = vmatpush1.msra.mxu0 0.0
    %402 = vmatprep.subr.mxu0 0.0
    %403 = vmatpush1.msra.mxu0 0.0
    %404 = vmatprep.subr.mxu0 0.0
    %405 = vmatpush1.msra.mxu0 0.0
    %406 = vmatprep.subr.mxu0 0.0
    %407 = vmatpush1.msra.mxu0 0.0
    %408 = vmatprep.subr.mxu0 0.0
    %409 = vmatpush1.msra.mxu0 0.0
    %410 = vmatprep.subr.mxu0 0.0
    %411 = vmatpush1.msra.mxu0 0.0
    %412 = vmatprep.subr.mxu0 0.0
    %413 = vmatpush1.msra.mxu0 0.0
    %414 = vmatprep.subr.mxu0 0.0
    %415 = vmatpush1.msra.mxu0 0.0
    %416 = vmatprep.subr.mxu0 0.0
    %417 = vmatpush1.msra.mxu0 0.0
    %418 = vmatprep.subr.mxu0 0.0
    %419 = vmatpush1.msra.mxu0 0.0
    %420 = vmatprep.mubr.f32.mxu0 0.0
    %421 = vmatmul.mubr.f32.gmra.mrb[0].mxu0 %v345
    %v422 = vpop.f32.mrb[0].mxu0
    %v423 = vadd.f32 0.0, %v422
    %v424 = vpop.f32.mrb[0].mxu0
    %425 = vmatprep.mubr.f32.mxu0 0.0
    %426 = vmatmul.mubr.f32.gmra.mrb[0].mxu0 %v348
    %v427 = vpop.f32.mrb[0].mxu0
    %v428 = vadd.f32 0.0, %v427
    %v429 = vpop.f32.mrb[0].mxu0
    %430 = vmatprep.mubr.f32.mxu0 0.0
    %431 = vmatmul.mubr.f32.gmra.mrb[0].mxu0 %v351
    %v432 = vpop.f32.mrb[0].mxu0
    %v433 = vadd.f32 0.0, %v432
    %v434 = vpop.f32.mrb[0].mxu0
    %435 = vdwg.mxu0
    %v436 = vadd.f32 %v323, %v423
    %v437 = vadd.f32 %v328, %v428
    %v438 = vadd.f32 %v333, %v433
    %v439 = vld [vmem:[#allocation2 + $0x3] sm:$0xff]
    %v440 = vld [vmem:[#allocation2 + $0xb] sm:$0xff]
    %v441 = vld [vmem:[#allocation2 + $0x13] sm:$0xff]
    %v442 = vld [vmem:[%s1 + $0x6c] sm:$0xff]
    %v443 = vld [vmem:[%s1 + $0x74] sm:$0xff]
    %v444 = vld [vmem:[%s1 + $0x7c] sm:$0xff]
    %v445 = vld [vmem:[%s1 + $0x84] sm:$0xff]
    %v446 = vld [vmem:[%s1 + $0x8c] sm:$0xf]
    %v448 = vsel %vm92, %v439, 0
    %v451 = vsel %vm92, %v440, 0
    %v454 = vsel %vm92, %v441, 0
    %v457 = vsel %vm160, %v446, 0
    %459 = vmatprep.subr.mxu0 0.0
    %460 = vmatpush1.msra.mxu0 %v442
    %461 = vmatprep.subr.mxu0 0.0
    %462 = vmatpush1.msra.mxu0 %v443
    %463 = vmatprep.subr.mxu0 0.0
    %464 = vmatpush1.msra.mxu0 %v444
    %465 = vmatprep.subr.mxu0 0.0
    %466 = vmatpush1.msra.mxu0 %v445
    %467 = vmatprep.subr.mxu0 0.0
    %468 = vmatpush1.msra.mxu0 %v457
    %469 = vmatprep.subr.mxu0 0.0
    %470 = vmatpush1.msra.mxu0 0.0
    %471 = vmatprep.subr.mxu0 0.0
    %472 = vmatpush1.msra.mxu0 0.0
    %473 = vmatprep.subr.mxu0 0.0
    %474 = vmatpush1.msra.mxu0 0.0
    %475 = vmatprep.subr.mxu0 0.0
    %476 = vmatpush1.msra.mxu0 0.0
    %477 = vmatprep.subr.mxu0 0.0
    %478 = vmatpush1.msra.mxu0 0.0
    %479 = vmatprep.subr.mxu0 0.0
    %480 = vmatpush1.msra.mxu0 0.0
    %481 = vmatprep.subr.mxu0 0.0
    %482 = vmatpush1.msra.mxu0 0.0
    %483 = vmatprep.subr.mxu0 0.0
    %484 = vmatpush1.msra.mxu0 0.0
    %485 = vmatprep.subr.mxu0 0.0
    %486 = vmatpush1.msra.mxu0 0.0
    %487 = vmatprep.subr.mxu0 0.0
    %488 = vmatpush1.msra.mxu0 0.0
    %489 = vmatprep.subr.mxu0 0.0
    %490 = vmatpush1.msra.mxu0 0.0
    %491 = vmatprep.subr.mxu0 0.0
    %492 = vmatpush1.msra.mxu0 0.0
    %493 = vmatprep.subr.mxu0 0.0
    %494 = vmatpush1.msra.mxu0 0.0
    %495 = vmatprep.subr.mxu0 0.0
    %496 = vmatpush1.msra.mxu0 0.0
    %497 = vmatprep.subr.mxu0 0.0
    %498 = vmatpush1.msra.mxu0 0.0
    %499 = vmatprep.subr.mxu0 0.0
    %500 = vmatpush1.msra.mxu0 0.0
    %501 = vmatprep.subr.mxu0 0.0
    %502 = vmatpush1.msra.mxu0 0.0
    %503 = vmatprep.subr.mxu0 0.0
    %504 = vmatpush1.msra.mxu0 0.0
    %505 = vmatprep.subr.mxu0 0.0
    %506 = vmatpush1.msra.mxu0 0.0
    %507 = vmatprep.subr.mxu0 0.0
    %508 = vmatpush1.msra.mxu0 0.0
    %509 = vmatprep.subr.mxu0 0.0
    %510 = vmatpush1.msra.mxu0 0.0
    %511 = vmatprep.subr.mxu0 0.0
    %512 = vmatpush1.msra.mxu0 0.0
    %513 = vmatprep.subr.mxu0 0.0
    %514 = vmatpush1.msra.mxu0 0.0
    %515 = vmatprep.subr.mxu0 0.0
    %516 = vmatpush1.msra.mxu0 0.0
    %517 = vmatprep.subr.mxu0 0.0
    %518 = vmatpush1.msra.mxu0 0.0
    %519 = vmatprep.subr.mxu0 0.0
    %520 = vmatpush1.msra.mxu0 0.0
    %521 = vmatprep.subr.mxu0 0.0
    %522 = vmatpush1.msra.mxu0 0.0
    %523 = vmatprep.mubr.f32.mxu0 0.0
    %524 = vmatmul.mubr.f32.gmra.mrb[0].mxu0 %v448
    %v525 = vpop.f32.mrb[0].mxu0
    %v526 = vadd.f32 0.0, %v525
    %v527 = vpop.f32.mrb[0].mxu0
    %528 = vmatprep.mubr.f32.mxu0 0.0
    %529 = vmatmul.mubr.f32.gmra.mrb[0].mxu0 %v451
    %v530 = vpop.f32.mrb[0].mxu0
    %v531 = vadd.f32 0.0, %v530
    %v532 = vpop.f32.mrb[0].mxu0
    %533 = vmatprep.mubr.f32.mxu0 0.0
    %534 = vmatmul.mubr.f32.gmra.mrb[0].mxu0 %v454
    %v535 = vpop.f32.mrb[0].mxu0
    %v536 = vadd.f32 0.0, %v535
    %v537 = vpop.f32.mrb[0].mxu0
    %538 = vdwg.mxu0
    %v539 = vadd.f32 %v436, %v526
    %v540 = vadd.f32 %v437, %v531
    %v541 = vadd.f32 %v438, %v536
    %v542 = vld [vmem:[#allocation2 + $0x4] sm:$0xff]
    %v543 = vld [vmem:[#allocation2 + $0xc] sm:$0xff]
    %v544 = vld [vmem:[#allocation2 + $0x14] sm:$0xff]
    %v545 = vld [vmem:[%s1 + $0x90] sm:$0xff]
    %v546 = vld [vmem:[%s1 + $0x98] sm:$0xff]
    %v547 = vld [vmem:[%s1 + $0xa0] sm:$0xff]
    %v548 = vld [vmem:[%s1 + $0xa8] sm:$0xff]
    %v549 = vld [vmem:[%s1 + $0xb0] sm:$0xf]
    %v551 = vsel %vm92, %v542, 0
    %v554 = vsel %vm92, %v543, 0
    %v557 = vsel %vm92, %v544, 0
    %v560 = vsel %vm160, %v549, 0
    %562 = vmatprep.subr.mxu0 0.0
    %563 = vmatpush1.msra.mxu0 %v545
    %564 = vmatprep.subr.mxu0 0.0
    %565 = vmatpush1.msra.mxu0 %v546
    %566 = vmatprep.subr.mxu0 0.0
    %567 = vmatpush1.msra.mxu0 %v547
    %568 = vmatprep.subr.mxu0 0.0
    %569 = vmatpush1.msra.mxu0 %v548
    %570 = vmatprep.subr.mxu0 0.0
    %571 = vmatpush1.msra.mxu0 %v560
    %572 = vmatprep.subr.mxu0 0.0
    %573 = vmatpush1.msra.mxu0 0.0
    %574 = vmatprep.subr.mxu0 0.0
    %575 = vmatpush1.msra.mxu0 0.0
    %576 = vmatprep.subr.mxu0 0.0
    %577 = vmatpush1.msra.mxu0 0.0
    %578 = vmatprep.subr.mxu0 0.0
    %579 = vmatpush1.msra.mxu0 0.0
    %580 = vmatprep.subr.mxu0 0.0
    %581 = vmatpush1.msra.mxu0 0.0
    %582 = vmatprep.subr.mxu0 0.0
    %583 = vmatpush1.msra.mxu0 0.0
    %584 = vmatprep.subr.mxu0 0.0
    %585 = vmatpush1.msra.mxu0 0.0
    %586 = vmatprep.subr.mxu0 0.0
    %587 = vmatpush1.msra.mxu0 0.0
    %588 = vmatprep.subr.mxu0 0.0
    %589 = vmatpush1.msra.mxu0 0.0
    %590 = vmatprep.subr.mxu0 0.0
    %591 = vmatpush1.msra.mxu0 0.0
    %592 = vmatprep.subr.mxu0 0.0
    %593 = vmatpush1.msra.mxu0 0.0
    %594 = vmatprep.subr.mxu0 0.0
    %595 = vmatpush1.msra.mxu0 0.0
    %596 = vmatprep.subr.mxu0 0.0
    %597 = vmatpush1.msra.mxu0 0.0
    %598 = vmatprep.subr.mxu0 0.0
    %599 = vmatpush1.msra.mxu0 0.0
    %600 = vmatprep.subr.mxu0 0.0
    %601 = vmatpush1.msra.mxu0 0.0
    %602 = vmatprep.subr.mxu0 0.0
    %603 = vmatpush1.msra.mxu0 0.0
    %604 = vmatprep.subr.mxu0 0.0
    %605 = vmatpush1.msra.mxu0 0.0
    %606 = vmatprep.subr.mxu0 0.0
    %607 = vmatpush1.msra.mxu0 0.0
    %608 = vmatprep.subr.mxu0 0.0
    %609 = vmatpush1.msra.mxu0 0.0
    %610 = vmatprep.subr.mxu0 0.0
    %611 = vmatpush1.msra.mxu0 0.0
    %612 = vmatprep.subr.mxu0 0.0
    %613 = vmatpush1.msra.mxu0 0.0
    %614 = vmatprep.subr.mxu0 0.0
    %615 = vmatpush1.msra.mxu0 0.0
    %616 = vmatprep.subr.mxu0 0.0
    %617 = vmatpush1.msra.mxu0 0.0
    %618 = vmatprep.subr.mxu0 0.0
    %619 = vmatpush1.msra.mxu0 0.0
    %620 = vmatprep.subr.mxu0 0.0
    %621 = vmatpush1.msra.mxu0 0.0
    %622 = vmatprep.subr.mxu0 0.0
    %623 = vmatpush1.msra.mxu0 0.0
    %624 = vmatprep.subr.mxu0 0.0
    %625 = vmatpush1.msra.mxu0 0.0
    %626 = vmatprep.mubr.f32.mxu0 0.0
    %627 = vmatmul.mubr.f32.gmra.mrb[0].mxu0 %v551
    %v628 = vpop.f32.mrb[0].mxu0
    %v629 = vadd.f32 0.0, %v628
    %v630 = vpop.f32.mrb[0].mxu0
    %631 = vmatprep.mubr.f32.mxu0 0.0
    %632 = vmatmul.mubr.f32.gmra.mrb[0].mxu0 %v554
    %v633 = vpop.f32.mrb[0].mxu0
    %v634 = vadd.f32 0.0, %v633
    %v635 = vpop.f32.mrb[0].mxu0
    %636 = vmatprep.mubr.f32.mxu0 0.0
    %637 = vmatmul.mubr.f32.gmra.mrb[0].mxu0 %v557
    %v638 = vpop.f32.mrb[0].mxu0
    %v639 = vadd.f32 0.0, %v638
    %v640 = vpop.f32.mrb[0].mxu0
    %641 = vdwg.mxu0
    %v642 = vadd.f32 %v539, %v629
    %v643 = vadd.f32 %v540, %v634
    %v644 = vadd.f32 %v541, %v639
    %v645 = vld [vmem:[%s2] sm:$0x1]
    %v647 = vlaneseq
    %v648 = vshrl.u32 %v647, 7
    %v649 = vsub.s32 0, %v648
    %v650 = vrot.slane %v645, %v649
    %v652 = vadd.f32 %v642, %v650
    %v653 = vadd.f32 %v643, %v650
    %v654 = vadd.f32 %v644, %v650
    %v655 = vmax.f32 %v652, 0.0
    %v656 = vmax.f32 %v653, 0.0
    %v657 = vmax.f32 %v654, 0.0
    %660 = vrot.lane.b32.xlu0 %v655, 16
    %v661 = vpop.permute.xlu0 %660
    %662 = vrot.lane.b32.xlu0 %v656, 16
    %v663 = vpop.permute.xlu0 %662
    %vm666 = vcmask 785536
    %667 = vst.msk [vmem:[#allocation3 + $0x1] sm:$0xff] %vm666, %v661
    %vm668 = vcmask 779392
    %669 = vst.msk [vmem:[#allocation3 + $0x9] sm:$0x3] %vm668, %v663
    %671 = vrot.lane.b32.xlu0 %v657, 16
    %v672 = vpop.permute.xlu0 %671
    %vm674 = vcmask 785542
    %675 = vst.msk [vmem:[#allocation3 + $0x7] sm:$0xc0] %vm674, %v663
    %676 = vst.msk [vmem:[#allocation3 + $0xf] sm:$0xff] %vm666, %v672
    %v677 = vld [vmem:[#allocation3] sm:$0xff]
    %v678 = vld [vmem:[#allocation3 + $0x8] sm:$0xff]
    %v679 = vld [vmem:[#allocation3 + $0x10] sm:$0x3f]
    %v680 = vld [vmem:[%s3] sm:$0xff]
    %v681 = vld [vmem:[%s3 + $0x8] sm:$0xff]
    %v682 = vld [vmem:[%s3 + $0x10] sm:$0xff]
    %v683 = vld [vmem:[%s3 + $0x18] sm:$0xff]
    %v684 = vld [vmem:[%s3 + $0x20] sm:$0xff]
    %v685 = vld [vmem:[%s3 + $0x28] sm:$0xff]
    %v686 = vld [vmem:[%s3 + $0x30] sm:$0xff]
    %v687 = vld [vmem:[%s3 + $0x38] sm:$0xff]
    %v688 = vld [vmem:[%s3 + $0x40] sm:$0xff]
    %v689 = vld [vmem:[%s3 + $0x48] sm:$0xff]
    %v690 = vld [vmem:[%s3 + $0x50] sm:$0xff]
    %v691 = vld [vmem:[%s3 + $0x58] sm:$0xff]
    %v692 = vld [vmem:[%s3 + $0x60] sm:$0xff]
    %v693 = vld [vmem:[%s3 + $0x68] sm:$0xff]
    %v694 = vld [vmem:[%s3 + $0x70] sm:$0xff]
    %v695 = vld [vmem:[%s3 + $0x78] sm:$0xff]
    %v696 = vld [vmem:[%s3 + $0x80] sm:$0xff]
    %v697 = vld [vmem:[%s3 + $0x88] sm:$0xff]
    %v698 = vld [vmem:[%s3 + $0x90] sm:$0xff]
    %v699 = vld [vmem:[%s3 + $0x98] sm:$0xff]
    %v700 = vld [vmem:[%s3 + $0xa0] sm:$0xff]
    %v701 = vld [vmem:[%s3 + $0xa8] sm:$0xff]
    %v702 = vld [vmem:[%s3 + $0xb0] sm:$0xff]
    %v703 = vld [vmem:[%s3 + $0xb8] sm:$0xff]
    %v704 = vld [vmem:[%s3 + $0xc0] sm:$0xff]
    %v705 = vld [vmem:[%s3 + $0xc8] sm:$0xff]
    %v706 = vld [vmem:[%s3 + $0xd0] sm:$0xff]
    %v707 = vld [vmem:[%s3 + $0xd8] sm:$0xff]
    %v708 = vld [vmem:[#allocation3 + $0x1] sm:$0xff]
    %v709 = vld [vmem:[#allocation3 + $0x9] sm:$0xff]
    %v710 = vld [vmem:[#allocation3 + $0x11] sm:$0x3f]
    %v711 = vld [vmem:[%s3 + $0xe0] sm:$0xff]
    %v712 = vld [vmem:[%s3 + $0xe8] sm:$0xff]
    %v713 = vld [vmem:[%s3 + $0xf0] sm:$0xff]
    %v714 = vld [vmem:[%s3 + $0xf8] sm:$0xff]
    %v715 = vld [vmem:[%s3 + $0x100] sm:$0xff]
    %v716 = vld [vmem:[%s3 + $0x108] sm:$0xff]
    %v717 = vld [vmem:[%s3 + $0x110] sm:$0xff]
    %v718 = vld [vmem:[%s3 + $0x118] sm:$0xff]
    %v719 = vld [vmem:[%s3 + $0x120] sm:$0xff]
    %v720 = vld [vmem:[%s3 + $0x128] sm:$0xff]
    %v721 = vld [vmem:[%s3 + $0x130] sm:$0xff]
    %v722 = vld [vmem:[%s3 + $0x138] sm:$0xff]
    %v723 = vld [vmem:[%s3 + $0x140] sm:$0xff]
    %v724 = vld [vmem:[%s3 + $0x148] sm:$0xff]
    %v725 = vld [vmem:[%s3 + $0x150] sm:$0xff]
    %v726 = vld [vmem:[%s3 + $0x158] sm:$0xff]
    %v727 = vld [vmem:[%s3 + $0x160] sm:$0xff]
    %v728 = vld [vmem:[%s3 + $0x168] sm:$0xff]
    %v729 = vld [vmem:[%s3 + $0x170] sm:$0xff]
    %v730 = vld [vmem:[%s3 + $0x178] sm:$0xff]
    %v731 = vld [vmem:[%s3 + $0x180] sm:$0xff]
    %v732 = vld [vmem:[%s3 + $0x188] sm:$0xff]
    %v733 = vld [vmem:[%s3 + $0x190] sm:$0xff]
    %v734 = vld [vmem:[%s3 + $0x198] sm:$0xff]
    %v735 = vld [vmem:[%s3 + $0x1a0] sm:$0xff]
    %v736 = vld [vmem:[%s3 + $0x1a8] sm:$0xff]
    %v737 = vld [vmem:[%s3 + $0x1b0] sm:$0xff]
    %v738 = vld [vmem:[%s3 + $0x1b8] sm:$0xff]
    %v740 = vsel %vm98, %v708, 0
    %v743 = vsel %vm98, %v709, 0
    %v746 = vsel %vm98, %v710, 0
    %748 = vmatprep.subr.mxu0 %v712
    %749 = vmatpush1.msra.mxu0 %v711
    %750 = vmatprep.subr.mxu0 %v714
    %751 = vmatpush1.msra.mxu0 %v713
    %752 = vmatprep.subr.mxu0 %v716
    %753 = vmatpush1.msra.mxu0 %v715
    %754 = vmatprep.subr.mxu0 %v718
    %755 = vmatpush1.msra.mxu0 %v717
    %756 = vmatprep.subr.mxu0 %v720
    %757 = vmatpush1.msra.mxu0 %v719
    %758 = vmatprep.subr.mxu0 %v722
    %759 = vmatpush1.msra.mxu0 %v721
    %760 = vmatprep.subr.mxu0 %v724
    %761 = vmatpush1.msra.mxu0 %v723
    %762 = vmatprep.subr.mxu0 %v726
    %763 = vmatpush1.msra.mxu0 %v725
    %764 = vmatprep.subr.mxu0 %v728
    %765 = vmatpush1.msra.mxu0 %v727
    %766 = vmatprep.subr.mxu0 %v730
    %767 = vmatpush1.msra.mxu0 %v729
    %768 = vmatprep.subr.mxu0 %v732
    %769 = vmatpush1.msra.mxu0 %v731
    %770 = vmatprep.subr.mxu0 %v734
    %771 = vmatpush1.msra.mxu0 %v733
    %772 = vmatprep.subr.mxu0 %v736
    %773 = vmatpush1.msra.mxu0 %v735
    %774 = vmatprep.subr.mxu0 %v738
    %775 = vmatpush1.msra.mxu0 %v737
    %776 = vmatprep.subr.mxu0 0.0
    %777 = vmatpush1.msra.mxu0 0.0
    %778 = vmatprep.subr.mxu0 0.0
    %779 = vmatpush1.msra.mxu0 0.0
    %780 = vmatprep.subr.mxu0 0.0
    %781 = vmatpush1.msra.mxu0 0.0
    %782 = vmatprep.subr.mxu0 0.0
    %783 = vmatpush1.msra.mxu0 0.0
    %784 = vmatprep.subr.mxu0 0.0
    %785 = vmatpush1.msra.mxu0 0.0
    %786 = vmatprep.subr.mxu0 0.0
    %787 = vmatpush1.msra.mxu0 0.0
    %788 = vmatprep.subr.mxu0 0.0
    %789 = vmatpush1.msra.mxu0 0.0
    %790 = vmatprep.subr.mxu0 0.0
    %791 = vmatpush1.msra.mxu0 0.0
    %792 = vmatprep.subr.mxu0 0.0
    %793 = vmatpush1.msra.mxu0 0.0
    %794 = vmatprep.subr.mxu0 0.0
    %795 = vmatpush1.msra.mxu0 0.0
    %796 = vmatprep.subr.mxu0 0.0
    %797 = vmatpush1.msra.mxu0 0.0
    %798 = vmatprep.subr.mxu0 0.0
    %799 = vmatpush1.msra.mxu0 0.0
    %800 = vmatprep.subr.mxu0 0.0
    %801 = vmatpush1.msra.mxu0 0.0
    %802 = vmatprep.subr.mxu0 0.0
    %803 = vmatpush1.msra.mxu0 0.0
    %804 = vmatprep.subr.mxu0 0.0
    %805 = vmatpush1.msra.mxu0 0.0
    %806 = vmatprep.subr.mxu0 0.0
    %807 = vmatpush1.msra.mxu0 0.0
    %808 = vmatprep.subr.mxu0 0.0
    %809 = vmatpush1.msra.mxu0 0.0
    %810 = vmatprep.subr.mxu0 0.0
    %811 = vmatpush1.msra.mxu0 0.0
    %812 = vmatprep.mubr.f32.mxu0 0.0
    %813 = vmatmul.mubr.f32.gmra.mrb[0].mxu0 %v740
    %v814 = vpop.f32.mrb[0].mxu0
    %v815 = vadd.f32 0.0, %v814
    %v816 = vpop.f32.mrb[0].mxu0
    %v817 = vadd.f32 0.0, %v816
    %818 = vmatprep.mubr.f32.mxu0 0.0
    %819 = vmatmul.mubr.f32.gmra.mrb[0].mxu0 %v743
    %v820 = vpop.f32.mrb[0].mxu0
    %v821 = vadd.f32 0.0, %v820
    %v822 = vpop.f32.mrb[0].mxu0
    %v823 = vadd.f32 0.0, %v822
    %824 = vmatprep.mubr.f32.mxu0 0.0
    %825 = vmatmul.mubr.f32.gmra.mrb[0].mxu0 %v746
    %v826 = vpop.f32.mrb[0].mxu0
    %v827 = vadd.f32 0.0, %v826
    %v828 = vpop.f32.mrb[0].mxu0
    %v829 = vadd.f32 0.0, %v828
    %830 = vdwg.mxu0
    %v832 = vsel %vm98, %v677, 0
    %v835 = vsel %vm98, %v678, 0
    %v838 = vsel %vm98, %v679, 0
    %840 = vmatprep.subr.mxu0 %v681
    %841 = vmatpush1.msra.mxu0 %v680
    %842 = vmatprep.subr.mxu0 %v683
    %843 = vmatpush1.msra.mxu0 %v682
    %844 = vmatprep.subr.mxu0 %v685
    %845 = vmatpush1.msra.mxu0 %v684
    %846 = vmatprep.subr.mxu0 %v687
    %847 = vmatpush1.msra.mxu0 %v686
    %848 = vmatprep.subr.mxu0 %v689
    %849 = vmatpush1.msra.mxu0 %v688
    %850 = vmatprep.subr.mxu0 %v691
    %851 = vmatpush1.msra.mxu0 %v690
    %852 = vmatprep.subr.mxu0 %v693
    %853 = vmatpush1.msra.mxu0 %v692
    %854 = vmatprep.subr.mxu0 %v695
    %855 = vmatpush1.msra.mxu0 %v694
    %856 = vmatprep.subr.mxu0 %v697
    %857 = vmatpush1.msra.mxu0 %v696
    %858 = vmatprep.subr.mxu0 %v699
    %859 = vmatpush1.msra.mxu0 %v698
    %860 = vmatprep.subr.mxu0 %v701
    %861 = vmatpush1.msra.mxu0 %v700
    %862 = vmatprep.subr.mxu0 %v703
    %863 = vmatpush1.msra.mxu0 %v702
    %864 = vmatprep.subr.mxu0 %v705
    %865 = vmatpush1.msra.mxu0 %v704
    %866 = vmatprep.subr.mxu0 %v707
    %867 = vmatpush1.msra.mxu0 %v706
    %868 = vmatprep.subr.mxu0 0.0
    %869 = vmatpush1.msra.mxu0 0.0
    %870 = vmatprep.subr.mxu0 0.0
    %871 = vmatpush1.msra.mxu0 0.0
    %872 = vmatprep.subr.mxu0 0.0
    %873 = vmatpush1.msra.mxu0 0.0
    %874 = vmatprep.subr.mxu0 0.0
    %875 = vmatpush1.msra.mxu0 0.0
    %876 = vmatprep.subr.mxu0 0.0
    %877 = vmatpush1.msra.mxu0 0.0
    %878 = vmatprep.subr.mxu0 0.0
    %879 = vmatpush1.msra.mxu0 0.0
    %880 = vmatprep.subr.mxu0 0.0
    %881 = vmatpush1.msra.mxu0 0.0
    %882 = vmatprep.subr.mxu0 0.0
    %883 = vmatpush1.msra.mxu0 0.0
    %884 = vmatprep.subr.mxu0 0.0
    %885 = vmatpush1.msra.mxu0 0.0
    %886 = vmatprep.subr.mxu0 0.0
    %887 = vmatpush1.msra.mxu0 0.0
    %888 = vmatprep.subr.mxu0 0.0
    %889 = vmatpush1.msra.mxu0 0.0
    %890 = vmatprep.subr.mxu0 0.0
    %891 = vmatpush1.msra.mxu0 0.0
    %892 = vmatprep.subr.mxu0 0.0
    %893 = vmatpush1.msra.mxu0 0.0
    %894 = vmatprep.subr.mxu0 0.0
    %895 = vmatpush1.msra.mxu0 0.0
    %896 = vmatprep.subr.mxu0 0.0
    %897 = vmatpush1.msra.mxu0 0.0
    %898 = vmatprep.subr.mxu0 0.0
    %899 = vmatpush1.msra.mxu0 0.0
    %900 = vmatprep.subr.mxu0 0.0
    %901 = vmatpush1.msra.mxu0 0.0
    %902 = vmatprep.subr.mxu0 0.0
    %903 = vmatpush1.msra.mxu0 0.0
    %904 = vmatprep.mubr.f32.mxu0 0.0
    %905 = vmatmul.mubr.f32.gmra.mrb[0].mxu0 %v832
    %v906 = vpop.f32.mrb[0].mxu0
    %v907 = vadd.f32 %v815, %v906
    %v908 = vpop.f32.mrb[0].mxu0
    %v909 = vadd.f32 %v817, %v908
    %910 = vmatprep.mubr.f32.mxu0 0.0
    %911 = vmatmul.mubr.f32.gmra.mrb[0].mxu0 %v835
    %v912 = vpop.f32.mrb[0].mxu0
    %v913 = vadd.f32 %v821, %v912
    %v914 = vpop.f32.mrb[0].mxu0
    %v915 = vadd.f32 %v823, %v914
    %916 = vmatprep.mubr.f32.mxu0 0.0
    %917 = vmatmul.mubr.f32.gmra.mrb[0].mxu0 %v838
    %v918 = vpop.f32.mrb[0].mxu0
    %v919 = vadd.f32 %v827, %v918
    %v920 = vpop.f32.mrb[0].mxu0
    %v921 = vadd.f32 %v829, %v920
    %922 = vdwg.mxu0
    %v923 = vld [vmem:[#allocation3 + $0x2] sm:$0xff]
    %v924 = vld [vmem:[#allocation3 + $0xa] sm:$0xff]
    %v925 = vld [vmem:[#allocation3 + $0x12] sm:$0x3f]
    %v926 = vld [vmem:[%s3 + $0x1c0] sm:$0xff]
    %v927 = vld [vmem:[%s3 + $0x1c8] sm:$0xff]
    %v928 = vld [vmem:[%s3 + $0x1d0] sm:$0xff]
    %v929 = vld [vmem:[%s3 + $0x1d8] sm:$0xff]
    %v930 = vld [vmem:[%s3 + $0x1e0] sm:$0xff]
    %v931 = vld [vmem:[%s3 + $0x1e8] sm:$0xff]
    %v932 = vld [vmem:[%s3 + $0x1f0] sm:$0xff]
    %v933 = vld [vmem:[%s3 + $0x1f8] sm:$0xff]
    %v934 = vld [vmem:[%s3 + $0x200] sm:$0xff]
    %v935 = vld [vmem:[%s3 + $0x208] sm:$0xff]
    %v936 = vld [vmem:[%s3 + $0x210] sm:$0xff]
    %v937 = vld [vmem:[%s3 + $0x218] sm:$0xff]
    %v938 = vld [vmem:[%s3 + $0x220] sm:$0xff]
    %v939 = vld [vmem:[%s3 + $0x228] sm:$0xff]
    %v940 = vld [vmem:[%s3 + $0x230] sm:$0xff]
    %v941 = vld [vmem:[%s3 + $0x238] sm:$0xff]
    %v942 = vld [vmem:[%s3 + $0x240] sm:$0xff]
    %v943 = vld [vmem:[%s3 + $0x248] sm:$0xff]
    %v944 = vld [vmem:[%s3 + $0x250] sm:$0xff]
    %v945 = vld [vmem:[%s3 + $0x258] sm:$0xff]
    %v946 = vld [vmem:[%s3 + $0x260] sm:$0xff]
    %v947 = vld [vmem:[%s3 + $0x268] sm:$0xff]
    %v948 = vld [vmem:[%s3 + $0x270] sm:$0xff]
    %v949 = vld [vmem:[%s3 + $0x278] sm:$0xff]
    %v950 = vld [vmem:[%s3 + $0x280] sm:$0xff]
    %v951 = vld [vmem:[%s3 + $0x288] sm:$0xff]
    %v952 = vld [vmem:[%s3 + $0x290] sm:$0xff]
    %v953 = vld [vmem:[%s3 + $0x298] sm:$0xff]
    %v955 = vsel %vm98, %v923, 0
    %v958 = vsel %vm98, %v924, 0
    %v961 = vsel %vm98, %v925, 0
    %963 = vmatprep.subr.mxu0 %v927
    %964 = vmatpush1.msra.mxu0 %v926
    %965 = vmatprep.subr.mxu0 %v929
    %966 = vmatpush1.msra.mxu0 %v928
    %967 = vmatprep.subr.mxu0 %v931
    %968 = vmatpush1.msra.mxu0 %v930
    %969 = vmatprep.subr.mxu0 %v933
    %970 = vmatpush1.msra.mxu0 %v932
    %971 = vmatprep.subr.mxu0 %v935
    %972 = vmatpush1.msra.mxu0 %v934
    %973 = vmatprep.subr.mxu0 %v937
    %974 = vmatpush1.msra.mxu0 %v936
    %975 = vmatprep.subr.mxu0 %v939
    %976 = vmatpush1.msra.mxu0 %v938
    %977 = vmatprep.subr.mxu0 %v941
    %978 = vmatpush1.msra.mxu0 %v940
    %979 = vmatprep.subr.mxu0 %v943
    %980 = vmatpush1.msra.mxu0 %v942
    %981 = vmatprep.subr.mxu0 %v945
    %982 = vmatpush1.msra.mxu0 %v944
    %983 = vmatprep.subr.mxu0 %v947
    %984 = vmatpush1.msra.mxu0 %v946
    %985 = vmatprep.subr.mxu0 %v949
    %986 = vmatpush1.msra.mxu0 %v948
    %987 = vmatprep.subr.mxu0 %v951
    %988 = vmatpush1.msra.mxu0 %v950
    %989 = vmatprep.subr.mxu0 %v953
    %990 = vmatpush1.msra.mxu0 %v952
    %991 = vmatprep.subr.mxu0 0.0
    %992 = vmatpush1.msra.mxu0 0.0
    %993 = vmatprep.subr.mxu0 0.0
    %994 = vmatpush1.msra.mxu0 0.0
    %995 = vmatprep.subr.mxu0 0.0
    %996 = vmatpush1.msra.mxu0 0.0
    %997 = vmatprep.subr.mxu0 0.0
    %998 = vmatpush1.msra.mxu0 0.0
    %999 = vmatprep.subr.mxu0 0.0
    %1000 = vmatpush1.msra.mxu0 0.0
    %1001 = vmatprep.subr.mxu0 0.0
    %1002 = vmatpush1.msra.mxu0 0.0
    %1003 = vmatprep.subr.mxu0 0.0
    %1004 = vmatpush1.msra.mxu0 0.0
    %1005 = vmatprep.subr.mxu0 0.0
    %1006 = vmatpush1.msra.mxu0 0.0
    %1007 = vmatprep.subr.mxu0 0.0
    %1008 = vmatpush1.msra.mxu0 0.0
    %1009 = vmatprep.subr.mxu0 0.0
    %1010 = vmatpush1.msra.mxu0 0.0
    %1011 = vmatprep.subr.mxu0 0.0
    %1012 = vmatpush1.msra.mxu0 0.0
    %1013 = vmatprep.subr.mxu0 0.0
    %1014 = vmatpush1.msra.mxu0 0.0
    %1015 = vmatprep.subr.mxu0 0.0
    %1016 = vmatpush1.msra.mxu0 0.0
    %1017 = vmatprep.subr.mxu0 0.0
    %1018 = vmatpush1.msra.mxu0 0.0
    %1019 = vmatprep.subr.mxu0 0.0
    %1020 = vmatpush1.msra.mxu0 0.0
    %1021 = vmatprep.subr.mxu0 0.0
    %1022 = vmatpush1.msra.mxu0 0.0
    %1023 = vmatprep.subr.mxu0 0.0
    %1024 = vmatpush1.msra.mxu0 0.0
    %1025 = vmatprep.subr.mxu0 0.0
    %1026 = vmatpush1.msra.mxu0 0.0
    %1027 = vmatprep.mubr.f32.mxu0 0.0
    %1028 = vmatmul.mubr.f32.gmra.mrb[0].mxu0 %v955
    %v1029 = vpop.f32.mrb[0].mxu0
    %v1030 = vadd.f32 0.0, %v1029
    %v1031 = vpop.f32.mrb[0].mxu0
    %v1032 = vadd.f32 0.0, %v1031
    %1033 = vmatprep.mubr.f32.mxu0 0.0
    %1034 = vmatmul.mubr.f32.gmra.mrb[0].mxu0 %v958
    %v1035 = vpop.f32.mrb[0].mxu0
    %v1036 = vadd.f32 0.0, %v1035
    %v1037 = vpop.f32.mrb[0].mxu0
    %v1038 = vadd.f32 0.0, %v1037
    %1039 = vmatprep.mubr.f32.mxu0 0.0
    %1040 = vmatmul.mubr.f32.gmra.mrb[0].mxu0 %v961
    %v1041 = vpop.f32.mrb[0].mxu0
    %v1042 = vadd.f32 0.0, %v1041
    %v1043 = vpop.f32.mrb[0].mxu0
    %v1044 = vadd.f32 0.0, %v1043
    %1045 = vdwg.mxu0
    %v1046 = vadd.f32 %v907, %v1030
    %v1047 = vadd.f32 %v909, %v1032
    %v1048 = vadd.f32 %v913, %v1036
    %v1049 = vadd.f32 %v915, %v1038
    %v1050 = vadd.f32 %v919, %v1042
    %v1051 = vadd.f32 %v921, %v1044
    %v1052 = vld [vmem:[%s4] sm:$0x3]
    %v1054 = vlaneseq
    %v1055 = vshrl.u32 %v1054, 7
    %v1056 = vsub.s32 0, %v1055
    %v1057 = vrot.slane %v1052, %v1056
    %v1058 = vlaneseq
    %v1059 = vshrl.u32 %v1058, 7
    %v1060 = vsub.s32 1, %v1059
    %v1061 = vrot.slane %v1052, %v1060
    %v1064 = vadd.f32 %v1046, %v1057
    %v1065 = vadd.f32 %v1047, %v1061
    %v1066 = vadd.f32 %v1048, %v1057
    %v1067 = vadd.f32 %v1049, %v1061
    %v1068 = vadd.f32 %v1050, %v1057
    %v1069 = vadd.f32 %v1051, %v1061
    %v1070 = vmax.f32 %v1064, 0.0
    %v1071 = vmax.f32 %v1065, 0.0
    %v1072 = vmax.f32 %v1066, 0.0
    %v1073 = vmax.f32 %v1067, 0.0
    %v1074 = vmax.f32 %v1068, 0.0
    %v1075 = vmax.f32 %v1069, 0.0
    %vm1080 = vcmask 1040384
    %v1081 = vrot.slane %v1070, 7
    %v1082 = vrot.slane %v1071, 7
    %v1083 = vrot.slane %v1072, 7
    %v1084 = vsel %vm1080, %v1081, %v1083
    %v1085 = vrot.slane %v1073, 7
    %v1086 = vsel %vm1080, %v1082, %v1085
    %1087 = vrot.lane.b32.xlu0 %v1081, 32
    %v1088 = vpop.permute.xlu0 %1087
    %1089 = vrot.lane.b32.xlu0 %v1082, 32
    %v1090 = vpop.permute.xlu0 %1089
    %1091 = vrot.lane.b32.xlu0 %v1084, 32
    %v1092 = vpop.permute.xlu0 %1091
    %1093 = vrot.lane.b32.xlu0 %v1086, 32
    %v1094 = vpop.permute.xlu0 %1093
    %vm1095 = vcmask 261120
    %v1096 = vsel %vm1095, %v1088, %v1090
    %v1097 = vsel %vm1095, %v1092, %v1094
    %vm1102 = vcmask 1047809
    %1103 = vst.msk [vmem:[#allocation4] sm:$0xfe] %vm1102, %v1088
    %vm1104 = vcmask 523265
    %1105 = vst.msk [vmem:[#allocation4 + $0x8] sm:$0xfe] %vm1104, %v1096
    %vm1106 = vcmask 1042688
    %1107 = vst.msk [vmem:[#allocation4 + $0x10] sm:$0x7] %vm1106, %v1092
    %vm1108 = vcmask 518144
    %1109 = vst.msk [vmem:[#allocation4 + $0x18] sm:$0x7] %vm1108, %v1097
    %v1112 = vrot.slane %v1074, 7
    %v1113 = vsel %vm1080, %v1083, %v1112
    %v1114 = vrot.slane %v1075, 7
    %v1115 = vsel %vm1080, %v1085, %v1114
    %1116 = vrot.lane.b32.xlu0 %v1083, 32
    %v1117 = vpop.permute.xlu0 %1116
    %1118 = vrot.lane.b32.xlu0 %v1085, 32
    %v1119 = vpop.permute.xlu0 %1118
    %1120 = vrot.lane.b32.xlu0 %v1113, 32
    %v1121 = vpop.permute.xlu0 %1120
    %1122 = vrot.lane.b32.xlu0 %v1115, 32
    %v1123 = vpop.permute.xlu0 %1122
    %v1124 = vsel %vm1095, %v1117, %v1119
    %v1125 = vsel %vm1095, %v1121, %v1123
    %vm1130 = vcmask 1047813
    %1131 = vst.msk [vmem:[#allocation4 + $0x10] sm:$0xe0] %vm1130, %v1117
    %vm1132 = vcmask 523269
    %1133 = vst.msk [vmem:[#allocation4 + $0x18] sm:$0xe0] %vm1132, %v1124
    %vm1134 = vcmask 1046784
    %1135 = vst.msk [vmem:[#allocation4 + $0x20] sm:$0x7f] %vm1134, %v1121
    %vm1136 = vcmask 522240
    %1137 = vst.msk [vmem:[#allocation4 + $0x28] sm:$0x7f] %vm1136, %v1125
    %v1138 = vld [vmem:[#allocation4] sm:$0xff]
    %v1139 = vld [vmem:[#allocation4 + $0x8] sm:$0xff]
    %v1140 = vld [vmem:[#allocation4 + $0x10] sm:$0xff]
    %v1141 = vld [vmem:[#allocation4 + $0x18] sm:$0xff]
    %v1142 = vld [vmem:[#allocation4 + $0x20] sm:$0xf]
    %v1143 = vld [vmem:[#allocation4 + $0x28] sm:$0xf]
    %v1144 = vld [vmem:[%s5] sm:$0xff]
    %v1145 = vld [vmem:[%s5 + $0x8] sm:$0xff]
    %v1146 = vld [vmem:[%s5 + $0x10] sm:$0xff]
    %v1147 = vld [vmem:[%s5 + $0x18] sm:$0xff]
    %v1148 = vld [vmem:[%s5 + $0x20] sm:$0xff]
    %v1149 = vld [vmem:[%s5 + $0x28] sm:$0xff]
    %v1150 = vld [vmem:[%s5 + $0x30] sm:$0xff]
    %v1151 = vld [vmem:[%s5 + $0x38] sm:$0xff]
    %v1152 = vld [vmem:[%s5 + $0x40] sm:$0xff]
    %v1153 = vld [vmem:[%s5 + $0x48] sm:$0xff]
    %v1154 = vld [vmem:[%s5 + $0x50] sm:$0xff]
    %v1155 = vld [vmem:[%s5 + $0x58] sm:$0xff]
    %v1156 = vld [vmem:[%s5 + $0x60] sm:$0xff]
    %v1157 = vld [vmem:[%s5 + $0x68] sm:$0xff]
    %v1158 = vld [vmem:[%s5 + $0x70] sm:$0xff]
    %v1159 = vld [vmem:[%s5 + $0x78] sm:$0xff]
    %v1160 = vld [vmem:[%s5 + $0x80] sm:$0xff]
    %v1161 = vld [vmem:[%s5 + $0x88] sm:$0xff]
    %v1162 = vld [vmem:[%s5 + $0x90] sm:$0xff]
    %v1163 = vld [vmem:[%s5 + $0x98] sm:$0xff]
    %v1164 = vld [vmem:[%s5 + $0xa0] sm:$0xff]
    %v1165 = vld [vmem:[%s5 + $0xa8] sm:$0xff]
    %v1166 = vld [vmem:[%s5 + $0xb0] sm:$0xff]
    %v1167 = vld [vmem:[%s5 + $0xb8] sm:$0xff]
    %v1168 = vld [vmem:[%s5 + $0xc0] sm:$0xff]
    %v1169 = vld [vmem:[%s5 + $0xc8] sm:$0xff]
    %v1170 = vld [vmem:[%s5 + $0xd0] sm:$0xff]
    %v1171 = vld [vmem:[%s5 + $0xd8] sm:$0xff]
    %v1172 = vld [vmem:[#allocation4] sm:$0xfc]
    %v1173 = vld [vmem:[#allocation4 + $0x8] sm:$0xfc]
    %v1174 = vld [vmem:[#allocation4 + $0x20] sm:$0x3f]
    %v1175 = vld [vmem:[#allocation4 + $0x28] sm:$0x3f]
    %v1176 = vld [vmem:[%s5 + $0xe0] sm:$0xff]
    %v1177 = vld [vmem:[%s5 + $0xe8] sm:$0xff]
    %v1178 = vld [vmem:[%s5 + $0xf0] sm:$0xff]
    %v1179 = vld [vmem:[%s5 + $0xf8] sm:$0xff]
    %v1180 = vld [vmem:[%s5 + $0x100] sm:$0xff]
    %v1181 = vld [vmem:[%s5 + $0x108] sm:$0xff]
    %v1182 = vld [vmem:[%s5 + $0x110] sm:$0xff]
    %v1183 = vld [vmem:[%s5 + $0x118] sm:$0xff]
    %v1184 = vld [vmem:[%s5 + $0x120] sm:$0xff]
    %v1185 = vld [vmem:[%s5 + $0x128] sm:$0xff]
    %v1186 = vld [vmem:[%s5 + $0x130] sm:$0xff]
    %v1187 = vld [vmem:[%s5 + $0x138] sm:$0xff]
    %v1188 = vld [vmem:[%s5 + $0x140] sm:$0xff]
    %v1189 = vld [vmem:[%s5 + $0x148] sm:$0xff]
    %v1190 = vld [vmem:[%s5 + $0x150] sm:$0xff]
    %v1191 = vld [vmem:[%s5 + $0x158] sm:$0xff]
    %v1192 = vld [vmem:[%s5 + $0x160] sm:$0xff]
    %v1193 = vld [vmem:[%s5 + $0x168] sm:$0xff]
    %v1194 = vld [vmem:[%s5 + $0x170] sm:$0xff]
    %v1195 = vld [vmem:[%s5 + $0x178] sm:$0xff]
    %v1196 = vld [vmem:[%s5 + $0x180] sm:$0xff]
    %v1197 = vld [vmem:[%s5 + $0x188] sm:$0xff]
    %v1198 = vld [vmem:[%s5 + $0x190] sm:$0xff]
    %v1199 = vld [vmem:[%s5 + $0x198] sm:$0xff]
    %v1200 = vld [vmem:[%s5 + $0x1a0] sm:$0xff]
    %v1201 = vld [vmem:[%s5 + $0x1a8] sm:$0xff]
    %v1202 = vld [vmem:[%s5 + $0x1b0] sm:$0xff]
    %v1203 = vld [vmem:[%s5 + $0x1b8] sm:$0xff]
    %vm1210 = vcmask 1045504
    %v1211 = vrot.slane %v1172, 2
    %v1212 = vrot.slane %v1140, 2
    %v1213 = vsel %vm1210, %v1211, %v1212
    %v1214 = vrot.slane %v1173, 2
    %v1215 = vrot.slane %v1141, 2
    %v1216 = vsel %vm1210, %v1214, %v1215
    %v1217 = vrot.slane %v1174, 2
    %v1218 = vsel %vm1210, %v1212, %v1217
    %v1219 = vrot.slane %v1175, 2
    %v1220 = vsel %vm1210, %v1215, %v1219
    %v1224 = vsel %vm103, %v1216, 0
    %v1226 = vsel %vm103, %v1220, 0
    %v1228 = vsel %vm103, %v1219, 0
    %1230 = vmatprep.subr.mxu0 0.0
    %1231 = vmatpush1.msra.mxu0 %v1176
    %1232 = vmatprep.subr.mxu0 0.0
    %1233 = vmatpush1.msra.mxu0 %v1177
    %1234 = vmatprep.subr.mxu0 0.0
    %1235 = vmatpush1.msra.mxu0 %v1178
    %1236 = vmatprep.subr.mxu0 0.0
    %1237 = vmatpush1.msra.mxu0 %v1179
    %1238 = vmatprep.subr.mxu0 0.0
    %1239 = vmatpush1.msra.mxu0 %v1180
    %1240 = vmatprep.subr.mxu0 0.0
    %1241 = vmatpush1.msra.mxu0 %v1181
    %1242 = vmatprep.subr.mxu0 0.0
    %1243 = vmatpush1.msra.mxu0 %v1182
    %1244 = vmatprep.subr.mxu0 0.0
    %1245 = vmatpush1.msra.mxu0 %v1183
    %1246 = vmatprep.subr.mxu0 0.0
    %1247 = vmatpush1.msra.mxu0 %v1184
    %1248 = vmatprep.subr.mxu0 0.0
    %1249 = vmatpush1.msra.mxu0 %v1185
    %1250 = vmatprep.subr.mxu0 0.0
    %1251 = vmatpush1.msra.mxu0 %v1186
    %1252 = vmatprep.subr.mxu0 0.0
    %1253 = vmatpush1.msra.mxu0 %v1187
    %1254 = vmatprep.subr.mxu0 0.0
    %1255 = vmatpush1.msra.mxu0 %v1188
    %1256 = vmatprep.subr.mxu0 0.0
    %1257 = vmatpush1.msra.mxu0 %v1189
    %1258 = vmatprep.subr.mxu0 0.0
    %1259 = vmatpush1.msra.mxu0 %v1190
    %1260 = vmatprep.subr.mxu0 0.0
    %1261 = vmatpush1.msra.mxu0 %v1191
    %1262 = vmatprep.subr.mxu0 0.0
    %1263 = vmatpush1.msra.mxu0 %v1192
    %1264 = vmatprep.subr.mxu0 0.0
    %1265 = vmatpush1.msra.mxu0 %v1193
    %1266 = vmatprep.subr.mxu0 0.0
    %1267 = vmatpush1.msra.mxu0 %v1194
    %1268 = vmatprep.subr.mxu0 0.0
    %1269 = vmatpush1.msra.mxu0 %v1195
    %1270 = vmatprep.subr.mxu0 0.0
    %1271 = vmatpush1.msra.mxu0 %v1196
    %1272 = vmatprep.subr.mxu0 0.0
    %1273 = vmatpush1.msra.mxu0 %v1197
    %1274 = vmatprep.subr.mxu0 0.0
    %1275 = vmatpush1.msra.mxu0 %v1198
    %1276 = vmatprep.subr.mxu0 0.0
    %1277 = vmatpush1.msra.mxu0 %v1199
    %1278 = vmatprep.subr.mxu0 0.0
    %1279 = vmatpush1.msra.mxu0 %v1200
    %1280 = vmatprep.subr.mxu0 0.0
    %1281 = vmatpush1.msra.mxu0 %v1201
    %1282 = vmatprep.subr.mxu0 0.0
    %1283 = vmatpush1.msra.mxu0 %v1202
    %1284 = vmatprep.subr.mxu0 0.0
    %1285 = vmatpush1.msra.mxu0 %v1203
    %1286 = vmatprep.subr.mxu0 0.0
    %1287 = vmatpush1.msra.mxu0 0.0
    %1288 = vmatprep.subr.mxu0 0.0
    %1289 = vmatpush1.msra.mxu0 0.0
    %1290 = vmatprep.subr.mxu0 0.0
    %1291 = vmatpush1.msra.mxu0 0.0
    %1292 = vmatprep.subr.mxu0 0.0
    %1293 = vmatpush1.msra.mxu0 0.0
    %1294 = vmatprep.mubr.f32.mxu0 %v1224
    %1295 = vmatmul.mubr.f32.gmra.mrb[0].mxu0 %v1213
    %v1296 = vpop.f32.mrb[0].mxu0
    %v1297 = vadd.f32 0.0, %v1296
    %v1298 = vpop.f32.mrb[0].mxu0
    %1299 = vmatprep.mubr.f32.mxu0 %v1226
    %1300 = vmatmul.mubr.f32.gmra.mrb[0].mxu0 %v1218
    %v1301 = vpop.f32.mrb[0].mxu0
    %v1302 = vadd.f32 0.0, %v1301
    %v1303 = vpop.f32.mrb[0].mxu0
    %1304 = vmatprep.mubr.f32.mxu0 %v1228
    %1305 = vmatmul.mubr.f32.gmra.mrb[0].mxu0 %v1217
    %v1306 = vpop.f32.mrb[0].mxu0
    %v1307 = vadd.f32 0.0, %v1306
    %v1308 = vpop.f32.mrb[0].mxu0
    %1309 = vdwg.mxu0
    %v1311 = vsel %vm103, %v1139, 0
    %v1313 = vsel %vm103, %v1141, 0
    %v1316 = vsel %vm103, %v1143, 0
    %1318 = vmatprep.subr.mxu0 0.0
    %1319 = vmatpush1.msra.mxu0 %v1144
    %1320 = vmatprep.subr.mxu0 0.0
    %1321 = vmatpush1.msra.mxu0 %v1145
    %1322 = vmatprep.subr.mxu0 0.0
    %1323 = vmatpush1.msra.mxu0 %v1146
    %1324 = vmatprep.subr.mxu0 0.0
    %1325 = vmatpush1.msra.mxu0 %v1147
    %1326 = vmatprep.subr.mxu0 0.0
    %1327 = vmatpush1.msra.mxu0 %v1148
    %1328 = vmatprep.subr.mxu0 0.0
    %1329 = vmatpush1.msra.mxu0 %v1149
    %1330 = vmatprep.subr.mxu0 0.0
    %1331 = vmatpush1.msra.mxu0 %v1150
    %1332 = vmatprep.subr.mxu0 0.0
    %1333 = vmatpush1.msra.mxu0 %v1151
    %1334 = vmatprep.subr.mxu0 0.0
    %1335 = vmatpush1.msra.mxu0 %v1152
    %1336 = vmatprep.subr.mxu0 0.0
    %1337 = vmatpush1.msra.mxu0 %v1153
    %1338 = vmatprep.subr.mxu0 0.0
    %1339 = vmatpush1.msra.mxu0 %v1154
    %1340 = vmatprep.subr.mxu0 0.0
    %1341 = vmatpush1.msra.mxu0 %v1155
    %1342 = vmatprep.subr.mxu0 0.0
    %1343 = vmatpush1.msra.mxu0 %v1156
    %1344 = vmatprep.subr.mxu0 0.0
    %1345 = vmatpush1.msra.mxu0 %v1157
    %1346 = vmatprep.subr.mxu0 0.0
    %1347 = vmatpush1.msra.mxu0 %v1158
    %1348 = vmatprep.subr.mxu0 0.0
    %1349 = vmatpush1.msra.mxu0 %v1159
    %1350 = vmatprep.subr.mxu0 0.0
    %1351 = vmatpush1.msra.mxu0 %v1160
    %1352 = vmatprep.subr.mxu0 0.0
    %1353 = vmatpush1.msra.mxu0 %v1161
    %1354 = vmatprep.subr.mxu0 0.0
    %1355 = vmatpush1.msra.mxu0 %v1162
    %1356 = vmatprep.subr.mxu0 0.0
    %1357 = vmatpush1.msra.mxu0 %v1163
    %1358 = vmatprep.subr.mxu0 0.0
    %1359 = vmatpush1.msra.mxu0 %v1164
    %1360 = vmatprep.subr.mxu0 0.0
    %1361 = vmatpush1.msra.mxu0 %v1165
    %1362 = vmatprep.subr.mxu0 0.0
    %1363 = vmatpush1.msra.mxu0 %v1166
    %1364 = vmatprep.subr.mxu0 0.0
    %1365 = vmatpush1.msra.mxu0 %v1167
    %1366 = vmatprep.subr.mxu0 0.0
    %1367 = vmatpush1.msra.mxu0 %v1168
    %1368 = vmatprep.subr.mxu0 0.0
    %1369 = vmatpush1.msra.mxu0 %v1169
    %1370 = vmatprep.subr.mxu0 0.0
    %1371 = vmatpush1.msra.mxu0 %v1170
    %1372 = vmatprep.subr.mxu0 0.0
    %1373 = vmatpush1.msra.mxu0 %v1171
    %1374 = vmatprep.subr.mxu0 0.0
    %1375 = vmatpush1.msra.mxu0 0.0
    %1376 = vmatprep.subr.mxu0 0.0
    %1377 = vmatpush1.msra.mxu0 0.0
    %1378 = vmatprep.subr.mxu0 0.0
    %1379 = vmatpush1.msra.mxu0 0.0
    %1380 = vmatprep.subr.mxu0 0.0
    %1381 = vmatpush1.msra.mxu0 0.0
    %1382 = vmatprep.mubr.f32.mxu0 %v1311
    %1383 = vmatmul.mubr.f32.gmra.mrb[0].mxu0 %v1138
    %v1384 = vpop.f32.mrb[0].mxu0
    %v1385 = vadd.f32 %v1297, %v1384
    %v1386 = vpop.f32.mrb[0].mxu0
    %1387 = vmatprep.mubr.f32.mxu0 %v1313
    %1388 = vmatmul.mubr.f32.gmra.mrb[0].mxu0 %v1140
    %v1389 = vpop.f32.mrb[0].mxu0
    %v1390 = vadd.f32 %v1302, %v1389
    %v1391 = vpop.f32.mrb[0].mxu0
    %1392 = vmatprep.mubr.f32.mxu0 %v1316
    %1393 = vmatmul.mubr.f32.gmra.mrb[0].mxu0 %v1142
    %v1394 = vpop.f32.mrb[0].mxu0
    %v1395 = vadd.f32 %v1307, %v1394
    %v1396 = vpop.f32.mrb[0].mxu0
    %1397 = vdwg.mxu0
    %v1398 = vld [vmem:[#allocation4] sm:$0xf0]
    %v1399 = vld [vmem:[#allocation4 + $0x8] sm:$0xf0]
    %v1400 = vld [vmem:[#allocation4 + $0x20] sm:$0xff]
    %v1401 = vld [vmem:[#allocation4 + $0x28] sm:$0xff]
    %v1402 = vld [vmem:[%s5 + $0x1c0] sm:$0xff]
    %v1403 = vld [vmem:[%s5 + $0x1c8] sm:$0xff]
    %v1404 = vld [vmem:[%s5 + $0x1d0] sm:$0xff]
    %v1405 = vld [vmem:[%s5 + $0x1d8] sm:$0xff]
    %v1406 = vld [vmem:[%s5 + $0x1e0] sm:$0xff]
    %v1407 = vld [vmem:[%s5 + $0x1e8] sm:$0xff]
    %v1408 = vld [vmem:[%s5 + $0x1f0] sm:$0xff]
    %v1409 = vld [vmem:[%s5 + $0x1f8] sm:$0xff]
    %v1410 = vld [vmem:[%s5 + $0x200] sm:$0xff]
    %v1411 = vld [vmem:[%s5 + $0x208] sm:$0xff]
    %v1412 = vld [vmem:[%s5 + $0x210] sm:$0xff]
    %v1413 = vld [vmem:[%s5 + $0x218] sm:$0xff]
    %v1414 = vld [vmem:[%s5 + $0x220] sm:$0xff]
    %v1415 = vld [vmem:[%s5 + $0x228] sm:$0xff]
    %v1416 = vld [vmem:[%s5 + $0x230] sm:$0xff]
    %v1417 = vld [vmem:[%s5 + $0x238] sm:$0xff]
    %v1418 = vld [vmem:[%s5 + $0x240] sm:$0xff]
    %v1419 = vld [vmem:[%s5 + $0x248] sm:$0xff]
    %v1420 = vld [vmem:[%s5 + $0x250] sm:$0xff]
    %v1421 = vld [vmem:[%s5 + $0x258] sm:$0xff]
    %v1422 = vld [vmem:[%s5 + $0x260] sm:$0xff]
    %v1423 = vld [vmem:[%s5 + $0x268] sm:$0xff]
    %v1424 = vld [vmem:[%s5 + $0x270] sm:$0xff]
    %v1425 = vld [vmem:[%s5 + $0x278] sm:$0xff]
    %v1426 = vld [vmem:[%s5 + $0x280] sm:$0xff]
    %v1427 = vld [vmem:[%s5 + $0x288] sm:$0xff]
    %v1428 = vld [vmem:[%s5 + $0x290] sm:$0xff]
    %v1429 = vld [vmem:[%s5 + $0x298] sm:$0xff]
    %v1434 = vrot.slane %v1398, 4
    %v1435 = vrot.slane %v1140, 4
    %v1436 = vsel %vm160, %v1434, %v1435
    %v1437 = vrot.slane %v1399, 4
    %v1438 = vrot.slane %v1141, 4
    %v1439 = vsel %vm160, %v1437, %v1438
    %v1440 = vrot.slane %v1400, 4
    %v1441 = vsel %vm160, %v1435, %v1440
    %v1442 = vrot.slane %v1401, 4
    %v1443 = vsel %vm160, %v1438, %v1442
    %v1447 = vsel %vm103, %v1439, 0
    %v1449 = vsel %vm103, %v1443, 0
    %v1451 = vsel %vm103, %v1442, 0
    %1453 = vmatprep.subr.mxu0 0.0
    %1454 = vmatpush1.msra.mxu0 %v1402
    %1455 = vmatprep.subr.mxu0 0.0
    %1456 = vmatpush1.msra.mxu0 %v1403
    %1457 = vmatprep.subr.mxu0 0.0
    %1458 = vmatpush1.msra.mxu0 %v1404
    %1459 = vmatprep.subr.mxu0 0.0
    %1460 = vmatpush1.msra.mxu0 %v1405
    %1461 = vmatprep.subr.mxu0 0.0
    %1462 = vmatpush1.msra.mxu0 %v1406
    %1463 = vmatprep.subr.mxu0 0.0
    %1464 = vmatpush1.msra.mxu0 %v1407
    %1465 = vmatprep.subr.mxu0 0.0
    %1466 = vmatpush1.msra.mxu0 %v1408
    %1467 = vmatprep.subr.mxu0 0.0
    %1468 = vmatpush1.msra.mxu0 %v1409
    %1469 = vmatprep.subr.mxu0 0.0
    %1470 = vmatpush1.msra.mxu0 %v1410
    %1471 = vmatprep.subr.mxu0 0.0
    %1472 = vmatpush1.msra.mxu0 %v1411
    %1473 = vmatprep.subr.mxu0 0.0
    %1474 = vmatpush1.msra.mxu0 %v1412
    %1475 = vmatprep.subr.mxu0 0.0
    %1476 = vmatpush1.msra.mxu0 %v1413
    %1477 = vmatprep.subr.mxu0 0.0
    %1478 = vmatpush1.msra.mxu0 %v1414
    %1479 = vmatprep.subr.mxu0 0.0
    %1480 = vmatpush1.msra.mxu0 %v1415
    %1481 = vmatprep.subr.mxu0 0.0
    %1482 = vmatpush1.msra.mxu0 %v1416
    %1483 = vmatprep.subr.mxu0 0.0
    %1484 = vmatpush1.msra.mxu0 %v1417
    %1485 = vmatprep.subr.mxu0 0.0
    %1486 = vmatpush1.msra.mxu0 %v1418
    %1487 = vmatprep.subr.mxu0 0.0
    %1488 = vmatpush1.msra.mxu0 %v1419
    %1489 = vmatprep.subr.mxu0 0.0
    %1490 = vmatpush1.msra.mxu0 %v1420
    %1491 = vmatprep.subr.mxu0 0.0
    %1492 = vmatpush1.msra.mxu0 %v1421
    %1493 = vmatprep.subr.mxu0 0.0
    %1494 = vmatpush1.msra.mxu0 %v1422
    %1495 = vmatprep.subr.mxu0 0.0
    %1496 = vmatpush1.msra.mxu0 %v1423
    %1497 = vmatprep.subr.mxu0 0.0
    %1498 = vmatpush1.msra.mxu0 %v1424
    %1499 = vmatprep.subr.mxu0 0.0
    %1500 = vmatpush1.msra.mxu0 %v1425
    %1501 = vmatprep.subr.mxu0 0.0
    %1502 = vmatpush1.msra.mxu0 %v1426
    %1503 = vmatprep.subr.mxu0 0.0
    %1504 = vmatpush1.msra.mxu0 %v1427
    %1505 = vmatprep.subr.mxu0 0.0
    %1506 = vmatpush1.msra.mxu0 %v1428
    %1507 = vmatprep.subr.mxu0 0.0
    %1508 = vmatpush1.msra.mxu0 %v1429
    %1509 = vmatprep.subr.mxu0 0.0
    %1510 = vmatpush1.msra.mxu0 0.0
    %1511 = vmatprep.subr.mxu0 0.0
    %1512 = vmatpush1.msra.mxu0 0.0
    %1513 = vmatprep.subr.mxu0 0.0
    %1514 = vmatpush1.msra.mxu0 0.0
    %1515 = vmatprep.subr.mxu0 0.0
    %1516 = vmatpush1.msra.mxu0 0.0
    %1517 = vmatprep.mubr.f32.mxu0 %v1447
    %1518 = vmatmul.mubr.f32.gmra.mrb[0].mxu0 %v1436
    %v1519 = vpop.f32.mrb[0].mxu0
    %v1520 = vadd.f32 0.0, %v1519
    %v1521 = vpop.f32.mrb[0].mxu0
    %1522 = vmatprep.mubr.f32.mxu0 %v1449
    %1523 = vmatmul.mubr.f32.gmra.mrb[0].mxu0 %v1441
    %v1524 = vpop.f32.mrb[0].mxu0
    %v1525 = vadd.f32 0.0, %v1524
    %v1526 = vpop.f32.mrb[0].mxu0
    %1527 = vmatprep.mubr.f32.mxu0 %v1451
    %1528 = vmatmul.mubr.f32.gmra.mrb[0].mxu0 %v1440
    %v1529 = vpop.f32.mrb[0].mxu0
    %v1530 = vadd.f32 0.0, %v1529
    %v1531 = vpop.f32.mrb[0].mxu0
    %1532 = vdwg.mxu0
    %v1533 = vadd.f32 %v1385, %v1520
    %v1534 = vadd.f32 %v1390, %v1525
    %v1535 = vadd.f32 %v1395, %v1530
    %v1536 = vld [vmem:[%s6] sm:$0x1]
    %v1538 = vlaneseq
    %v1539 = vshrl.u32 %v1538, 7
    %v1540 = vsub.s32 0, %v1539
    %v1541 = vrot.slane %v1536, %v1540
    %v1543 = vadd.f32 %v1533, %v1541
    %v1544 = vadd.f32 %v1534, %v1541
    %v1545 = vadd.f32 %v1535, %v1541
    %v1546 = vmax.f32 %v1543, 0.0
    %v1547 = vmax.f32 %v1544, 0.0
    %v1548 = vmax.f32 %v1545, 0.0
    %1549 = vst [vmem:[#allocation5] sm:$0x1] %v1546
    %v1552 = vunpack.c.l.s4 1983009808
    %v1553 = vunpack.c.0.s8 %v1552
    %v1554 = vlaneseq
    %v1555 = vshrl.u32 %v1554, 7
    %v1556 = vsub.s32 %v1553, %v1555
    %v1557 = vrot.slane %v1546, %v1556
    %v1558 = vrot.slane %v1557, 7
    %v1559 = vrot.slane %v1558, 2
    %1561 = vst [vmem:[#allocation5 + $0x2] sm:$0x1] %v1559
    %v1562 = vcombine.high %v1557, %v1557
    %1564 = vst [vmem:[#allocation5 + $0x4] sm:$0x1] %v1562
    %v1565 = vrot.slane %v1562, 7
    %v1566 = vrot.slane %v1565, 2
    %1568 = vst [vmem:[#allocation5 + $0x6] sm:$0x1] %v1566
    %v1569 = vcombine.high %v1546, %v1546
    %v1571 = vunpack.c.l.s4 1983009808
    %v1572 = vunpack.c.0.s8 %v1571
    %v1573 = vlaneseq
    %v1574 = vshrl.u32 %v1573, 7
    %v1575 = vsub.s32 %v1572, %v1574
    %v1576 = vrot.slane %v1569, %v1575
    %1578 = vst [vmem:[#allocation5 + $0x8] sm:$0x1] %v1576
    %v1579 = vrot.slane %v1576, 7
    %v1580 = vrot.slane %v1579, 2
    %1582 = vst [vmem:[#allocation5 + $0xa] sm:$0x1] %v1580
    %v1583 = vcombine.high %v1576, %v1576
    %1585 = vst [vmem:[#allocation5 + $0xc] sm:$0x1] %v1583
    %v1586 = vrot.slane %v1583, 7
    %v1587 = vrot.slane %v1586, 2
    %1589 = vst [vmem:[#allocation5 + $0xe] sm:$0x1] %v1587
    %v1591 = vcombine.high %v1547, %v1547
    %v1593 = vunpack.c.l.s4 1983009808
    %v1594 = vunpack.c.0.s8 %v1593
    %v1595 = vlaneseq
    %v1596 = vshrl.u32 %v1595, 7
    %v1597 = vsub.s32 %v1594, %v1596
    %v1598 = vrot.slane %v1591, %v1597
    %1600 = vst [vmem:[#allocation5 + $0x1] sm:$0x1] %v1598
    %v1601 = vrot.slane %v1598, 7
    %v1602 = vrot.slane %v1601, 2
    %1604 = vst [vmem:[#allocation5 + $0x3] sm:$0x1] %v1602
    %v1605 = vcombine.high %v1598, %v1598
    %1607 = vst [vmem:[#allocation5 + $0x5] sm:$0x1] %v1605
    %v1608 = vrot.slane %v1605, 7
    %v1609 = vrot.slane %v1608, 2
    %1611 = vst [vmem:[#allocation5 + $0x7] sm:$0x1] %v1609
    %1612 = vst [vmem:[#allocation5 + $0x9] sm:$0x1] %v1548
    %v1615 = vunpack.c.l.s4 1983009808
    %v1616 = vunpack.c.0.s8 %v1615
    %v1617 = vlaneseq
    %v1618 = vshrl.u32 %v1617, 7
    %v1619 = vsub.s32 %v1616, %v1618
    %v1620 = vrot.slane %v1548, %v1619
    %v1621 = vrot.slane %v1620, 7
    %v1622 = vrot.slane %v1621, 2
    %1624 = vst [vmem:[#allocation5 + $0xb] sm:$0x1] %v1622
    %v1625 = vcombine.high %v1620, %v1620
    %1627 = vst [vmem:[#allocation5 + $0xd] sm:$0x1] %v1625
    %v1628 = vrot.slane %v1625, 7
    %v1629 = vrot.slane %v1628, 2
    %1631 = vst [vmem:[#allocation5 + $0xf] sm:$0x1] %v1629
    %v1632 = vld [vmem:[#allocation5] sm:$0xff]
    %v1633 = vld [vmem:[#allocation5 + $0x8] sm:$0xff]
    %v1634 = vld [vmem:[%s7] sm:$0xff]
    %v1635 = vld [vmem:[%s7 + $0x8] sm:$0xff]
    %v1636 = vld [vmem:[%s7 + $0x10] sm:$0xff]
    %v1637 = vld [vmem:[%s7 + $0x18] sm:$0xff]
    %v1638 = vld [vmem:[%s7 + $0x20] sm:$0xff]
    %v1639 = vld [vmem:[%s7 + $0x28] sm:$0xff]
    %v1640 = vld [vmem:[%s7 + $0x30] sm:$0xff]
    %v1641 = vld [vmem:[%s7 + $0x38] sm:$0xff]
    %v1642 = vld [vmem:[%s7 + $0x40] sm:$0xff]
    %v1643 = vld [vmem:[%s7 + $0x48] sm:$0xff]
    %v1644 = vld [vmem:[%s7 + $0x50] sm:$0xff]
    %v1645 = vld [vmem:[%s7 + $0x58] sm:$0xff]
    %v1646 = vld [vmem:[%s7 + $0x60] sm:$0xff]
    %v1647 = vld [vmem:[%s7 + $0x68] sm:$0xff]
    %v1648 = vld [vmem:[%s7 + $0x70] sm:$0xff]
    %v1649 = vld [vmem:[%s7 + $0x78] sm:$0xff]
    %v1650 = vld [vmem:[%s7 + $0x80] sm:$0xff]
    %v1651 = vld [vmem:[%s7 + $0x88] sm:$0xff]
    %v1652 = vld [vmem:[%s7 + $0x90] sm:$0xff]
    %v1653 = vld [vmem:[%s7 + $0x98] sm:$0xff]
    %v1654 = vld [vmem:[%s7 + $0xa0] sm:$0xff]
    %v1655 = vld [vmem:[%s7 + $0xa8] sm:$0xff]
    %v1656 = vld [vmem:[%s7 + $0xb0] sm:$0xff]
    %v1657 = vld [vmem:[%s7 + $0xb8] sm:$0xff]
    %v1658 = vld [vmem:[%s7 + $0xc0] sm:$0xff]
    %v1659 = vld [vmem:[%s7 + $0xc8] sm:$0xff]
    %v1660 = vld [vmem:[%s7 + $0xd0] sm:$0xff]
    %v1661 = vld [vmem:[%s7 + $0xd8] sm:$0xff]
    %v1662 = vld [vmem:[%s7 + $0xe0] sm:$0xff]
    %v1663 = vld [vmem:[%s7 + $0xe8] sm:$0xff]
    %v1664 = vld [vmem:[%s7 + $0xf0] sm:$0xff]
    %v1665 = vld [vmem:[%s7 + $0xf8] sm:$0xff]
    %v1666 = vld [vmem:[%s7 + $0x100] sm:$0xff]
    %v1667 = vld [vmem:[%s7 + $0x108] sm:$0xff]
    %v1668 = vld [vmem:[%s7 + $0x110] sm:$0xff]
    %v1669 = vld [vmem:[%s7 + $0x118] sm:$0xff]
    %v1670 = vld [vmem:[%s7 + $0x120] sm:$0xff]
    %v1671 = vld [vmem:[%s7 + $0x128] sm:$0xff]
    %v1672 = vld [vmem:[%s7 + $0x130] sm:$0xff]
    %v1673 = vld [vmem:[%s7 + $0x138] sm:$0xff]
    %v1674 = vld [vmem:[%s7 + $0x140] sm:$0xff]
    %v1675 = vld [vmem:[%s7 + $0x148] sm:$0xff]
    %v1676 = vld [vmem:[%s7 + $0x150] sm:$0xff]
    %v1677 = vld [vmem:[%s7 + $0x158] sm:$0xff]
    %v1678 = vld [vmem:[%s7 + $0x160] sm:$0xff]
    %v1679 = vld [vmem:[%s7 + $0x168] sm:$0xff]
    %v1680 = vld [vmem:[%s7 + $0x170] sm:$0xff]
    %v1681 = vld [vmem:[%s7 + $0x178] sm:$0xff]
    %v1682 = vld [vmem:[%s7 + $0x180] sm:$0xff]
    %v1683 = vld [vmem:[%s7 + $0x188] sm:$0xff]
    %v1684 = vld [vmem:[%s7 + $0x190] sm:$0xff]
    %v1685 = vld [vmem:[%s7 + $0x198] sm:$0xff]
    %v1686 = vld [vmem:[%s7 + $0x1a0] sm:$0xff]
    %v1687 = vld [vmem:[%s7 + $0x1a8] sm:$0xff]
    %v1688 = vld [vmem:[%s7 + $0x1b0] sm:$0xff]
    %v1689 = vld [vmem:[%s7 + $0x1b8] sm:$0xff]
    %v1690 = vld [vmem:[%s7 + $0x1c0] sm:$0xff]
    %v1691 = vld [vmem:[%s7 + $0x1c8] sm:$0xff]
    %v1692 = vld [vmem:[%s7 + $0x1d0] sm:$0xff]
    %v1693 = vld [vmem:[%s7 + $0x1d8] sm:$0xff]
    %v1694 = vld [vmem:[%s7 + $0x1e0] sm:$0xff]
    %v1695 = vld [vmem:[%s7 + $0x1e8] sm:$0xff]
    %v1696 = vld [vmem:[%s7 + $0x1f0] sm:$0xff]
    %v1697 = vld [vmem:[%s7 + $0x1f8] sm:$0xff]
    %v1698 = vld [vmem:[%s7 + $0x200] sm:$0xff]
    %v1699 = vld [vmem:[%s7 + $0x208] sm:$0xff]
    %v1700 = vld [vmem:[%s7 + $0x210] sm:$0xff]
    %v1701 = vld [vmem:[%s7 + $0x218] sm:$0xff]
    %v1702 = vld [vmem:[%s7 + $0x220] sm:$0xff]
    %v1703 = vld [vmem:[%s7 + $0x228] sm:$0xff]
    %v1704 = vld [vmem:[%s7 + $0x230] sm:$0xff]
    %v1705 = vld [vmem:[%s7 + $0x238] sm:$0xff]
    %v1706 = vld [vmem:[%s7 + $0x240] sm:$0xff]
    %v1707 = vld [vmem:[%s7 + $0x248] sm:$0xff]
    %v1708 = vld [vmem:[%s7 + $0x250] sm:$0xff]
    %v1709 = vld [vmem:[%s7 + $0x258] sm:$0xff]
    %v1710 = vld [vmem:[%s7 + $0x260] sm:$0xff]
    %v1711 = vld [vmem:[%s7 + $0x268] sm:$0xff]
    %v1712 = vld [vmem:[%s7 + $0x270] sm:$0xff]
    %v1713 = vld [vmem:[%s7 + $0x278] sm:$0xff]
    %v1714 = vld [vmem:[%s7 + $0x280] sm:$0xff]
    %v1715 = vld [vmem:[%s7 + $0x288] sm:$0xff]
    %v1716 = vld [vmem:[%s7 + $0x290] sm:$0xff]
    %v1717 = vld [vmem:[%s7 + $0x298] sm:$0xff]
    %v1718 = vld [vmem:[%s7 + $0x2a0] sm:$0xff]
    %v1719 = vld [vmem:[%s7 + $0x2a8] sm:$0xff]
    %v1720 = vld [vmem:[%s7 + $0x2b0] sm:$0xff]
    %v1721 = vld [vmem:[%s7 + $0x2b8] sm:$0xff]
    %v1722 = vld [vmem:[%s7 + $0x2c0] sm:$0xff]
    %v1723 = vld [vmem:[%s7 + $0x2c8] sm:$0xff]
    %v1724 = vld [vmem:[%s7 + $0x2d0] sm:$0xff]
    %v1725 = vld [vmem:[%s7 + $0x2d8] sm:$0xff]
    %v1726 = vld [vmem:[%s7 + $0x2e0] sm:$0xff]
    %v1727 = vld [vmem:[%s7 + $0x2e8] sm:$0xff]
    %v1728 = vld [vmem:[%s7 + $0x2f0] sm:$0xff]
    %v1729 = vld [vmem:[%s7 + $0x2f8] sm:$0xff]
    %v1730 = vld [vmem:[%s7 + $0x300] sm:$0xff]
    %v1731 = vld [vmem:[%s7 + $0x308] sm:$0xff]
    %v1732 = vld [vmem:[%s7 + $0x310] sm:$0xff]
    %v1733 = vld [vmem:[%s7 + $0x318] sm:$0xff]
    %v1734 = vld [vmem:[%s7 + $0x320] sm:$0xff]
    %v1735 = vld [vmem:[%s7 + $0x328] sm:$0xff]
    %v1736 = vld [vmem:[%s7 + $0x330] sm:$0xff]
    %v1737 = vld [vmem:[%s7 + $0x338] sm:$0xff]
    %v1738 = vld [vmem:[%s7 + $0x340] sm:$0xff]
    %v1739 = vld [vmem:[%s7 + $0x348] sm:$0xff]
    %v1740 = vld [vmem:[%s7 + $0x350] sm:$0xff]
    %v1741 = vld [vmem:[%s7 + $0x358] sm:$0xff]
    %v1742 = vld [vmem:[%s7 + $0x360] sm:$0xff]
    %v1743 = vld [vmem:[%s7 + $0x368] sm:$0xff]
    %v1744 = vld [vmem:[%s7 + $0x370] sm:$0xff]
    %v1745 = vld [vmem:[%s7 + $0x378] sm:$0xff]
    %v1746 = vld [vmem:[%s7 + $0x380] sm:$0xff]
    %v1747 = vld [vmem:[%s7 + $0x388] sm:$0xff]
    %v1748 = vld [vmem:[%s7 + $0x390] sm:$0xff]
    %v1749 = vld [vmem:[%s7 + $0x398] sm:$0xff]
    %v1750 = vld [vmem:[%s7 + $0x3a0] sm:$0xff]
    %v1751 = vld [vmem:[%s7 + $0x3a8] sm:$0xff]
    %v1752 = vld [vmem:[%s7 + $0x3b0] sm:$0xff]
    %v1753 = vld [vmem:[%s7 + $0x3b8] sm:$0xff]
    %v1754 = vld [vmem:[%s7 + $0x3c0] sm:$0xff]
    %v1755 = vld [vmem:[%s7 + $0x3c8] sm:$0xff]
    %v1756 = vld [vmem:[%s7 + $0x3d0] sm:$0xff]
    %v1757 = vld [vmem:[%s7 + $0x3d8] sm:$0xff]
    %v1758 = vld [vmem:[%s7 + $0x3e0] sm:$0xff]
    %v1759 = vld [vmem:[%s7 + $0x3e8] sm:$0xff]
    %v1760 = vld [vmem:[%s7 + $0x3f0] sm:$0xff]
    %v1761 = vld [vmem:[%s7 + $0x3f8] sm:$0xff]
    %v1762 = vld [vmem:[%s8] sm:$0x1]
    %v1764 = vlaneseq
    %v1765 = vshrl.u32 %v1764, 7
    %v1766 = vsub.s32 0, %v1765
    %v1767 = vrot.slane %v1762, %v1766
    %v1771 = vcombine.high %v1632, %v1632
    %v1773 = vunpack.c.l.s4 1983009808
    %v1774 = vunpack.c.0.s8 %v1773
    %v1775 = vlaneseq
    %v1776 = vshrl.u32 %v1775, 7
    %v1777 = vsub.s32 %v1774, %v1776
    %v1778 = vrot.slane %v1632, %v1777
    %v1780 = vunpack.c.l.s4 1983009808
    %v1781 = vunpack.c.0.s8 %v1780
    %v1782 = vlaneseq
    %v1783 = vshrl.u32 %v1782, 7
    %v1784 = vsub.s32 %v1781, %v1783
    %v1785 = vrot.slane %v1771, %v1784
    %v1786 = vcombine.high %v1778, %v1778
    %v1787 = vcombine.high %v1785, %v1785
    %v1788 = vcombine.high %v1633, %v1633
    %v1790 = vunpack.c.l.s4 1983009808
    %v1791 = vunpack.c.0.s8 %v1790
    %v1792 = vlaneseq
    %v1793 = vshrl.u32 %v1792, 7
    %v1794 = vsub.s32 %v1791, %v1793
    %v1795 = vrot.slane %v1633, %v1794
    %v1797 = vunpack.c.l.s4 1983009808
    %v1798 = vunpack.c.0.s8 %v1797
    %v1799 = vlaneseq
    %v1800 = vshrl.u32 %v1799, 7
    %v1801 = vsub.s32 %v1798, %v1800
    %v1802 = vrot.slane %v1788, %v1801
    %v1803 = vcombine.high %v1795, %v1795
    %v1804 = vcombine.high %v1802, %v1802
    %1813 = vmatprep.subr.mxu0 0.0
    %1814 = vmatpush1.msra.mxu0 %v1634
    %1815 = vmatprep.subr.mxu0 0.0
    %1816 = vmatpush1.msra.mxu0 %v1635
    %1817 = vmatprep.subr.mxu0 0.0
    %1818 = vmatpush1.msra.mxu0 %v1636
    %1819 = vmatprep.subr.mxu0 0.0
    %1820 = vmatpush1.msra.mxu0 %v1637
    %1821 = vmatprep.subr.mxu0 0.0
    %1822 = vmatpush1.msra.mxu0 %v1638
    %1823 = vmatprep.subr.mxu0 0.0
    %1824 = vmatpush1.msra.mxu0 %v1639
    %1825 = vmatprep.subr.mxu0 0.0
    %1826 = vmatpush1.msra.mxu0 %v1640
    %1827 = vmatprep.subr.mxu0 0.0
    %1828 = vmatpush1.msra.mxu0 %v1641
    %1829 = vmatprep.subr.mxu0 0.0
    %1830 = vmatpush1.msra.mxu0 %v1642
    %1831 = vmatprep.subr.mxu0 0.0
    %1832 = vmatpush1.msra.mxu0 %v1643
    %1833 = vmatprep.subr.mxu0 0.0
    %1834 = vmatpush1.msra.mxu0 %v1644
    %1835 = vmatprep.subr.mxu0 0.0
    %1836 = vmatpush1.msra.mxu0 %v1645
    %1837 = vmatprep.subr.mxu0 0.0
    %1838 = vmatpush1.msra.mxu0 %v1646
    %1839 = vmatprep.subr.mxu0 0.0
    %1840 = vmatpush1.msra.mxu0 %v1647
    %1841 = vmatprep.subr.mxu0 0.0
    %1842 = vmatpush1.msra.mxu0 %v1648
    %1843 = vmatprep.subr.mxu0 0.0
    %1844 = vmatpush1.msra.mxu0 %v1649
    %1845 = vmatprep.subr.mxu0 0.0
    %1846 = vmatpush1.msra.mxu0 %v1650
    %1847 = vmatprep.subr.mxu0 0.0
    %1848 = vmatpush1.msra.mxu0 %v1651
    %1849 = vmatprep.subr.mxu0 0.0
    %1850 = vmatpush1.msra.mxu0 %v1652
    %1851 = vmatprep.subr.mxu0 0.0
    %1852 = vmatpush1.msra.mxu0 %v1653
    %1853 = vmatprep.subr.mxu0 0.0
    %1854 = vmatpush1.msra.mxu0 %v1654
    %1855 = vmatprep.subr.mxu0 0.0
    %1856 = vmatpush1.msra.mxu0 %v1655
    %1857 = vmatprep.subr.mxu0 0.0
    %1858 = vmatpush1.msra.mxu0 %v1656
    %1859 = vmatprep.subr.mxu0 0.0
    %1860 = vmatpush1.msra.mxu0 %v1657
    %1861 = vmatprep.subr.mxu0 0.0
    %1862 = vmatpush1.msra.mxu0 %v1658
    %1863 = vmatprep.subr.mxu0 0.0
    %1864 = vmatpush1.msra.mxu0 %v1659
    %1865 = vmatprep.subr.mxu0 0.0
    %1866 = vmatpush1.msra.mxu0 %v1660
    %1867 = vmatprep.subr.mxu0 0.0
    %1868 = vmatpush1.msra.mxu0 %v1661
    %1869 = vmatprep.subr.mxu0 0.0
    %1870 = vmatpush1.msra.mxu0 %v1662
    %1871 = vmatprep.subr.mxu0 0.0
    %1872 = vmatpush1.msra.mxu0 %v1663
    %1873 = vmatprep.subr.mxu0 0.0
    %1874 = vmatpush1.msra.mxu0 %v1664
    %1875 = vmatprep.subr.mxu0 0.0
    %1876 = vmatpush1.msra.mxu0 %v1665
    %1877 = vmatprep.mubr.f32.mxu0 %v1786
    %1878 = vmatmul.mubr.f32.gmra.mrb[0].mxu0 %v1778
    %v1879 = vpop.f32.mrb[0].mxu0
    %v1880 = vadd.f32 %v1767, %v1879
    %v1881 = vpop.f32.mrb[0].mxu0
    %1882 = vdwg.mxu0
    %1883 = vmatprep.subr.mxu0 0.0
    %1884 = vmatpush1.msra.mxu0 %v1666
    %1885 = vmatprep.subr.mxu0 0.0
    %1886 = vmatpush1.msra.mxu0 %v1667
    %1887 = vmatprep.subr.mxu0 0.0
    %1888 = vmatpush1.msra.mxu0 %v1668
    %1889 = vmatprep.subr.mxu0 0.0
    %1890 = vmatpush1.msra.mxu0 %v1669
    %1891 = vmatprep.subr.mxu0 0.0
    %1892 = vmatpush1.msra.mxu0 %v1670
    %1893 = vmatprep.subr.mxu0 0.0
    %1894 = vmatpush1.msra.mxu0 %v1671
    %1895 = vmatprep.subr.mxu0 0.0
    %1896 = vmatpush1.msra.mxu0 %v1672
    %1897 = vmatprep.subr.mxu0 0.0
    %1898 = vmatpush1.msra.mxu0 %v1673
    %1899 = vmatprep.subr.mxu0 0.0
    %1900 = vmatpush1.msra.mxu0 %v1674
    %1901 = vmatprep.subr.mxu0 0.0
    %1902 = vmatpush1.msra.mxu0 %v1675
    %1903 = vmatprep.subr.mxu0 0.0
    %1904 = vmatpush1.msra.mxu0 %v1676
    %1905 = vmatprep.subr.mxu0 0.0
    %1906 = vmatpush1.msra.mxu0 %v1677
    %1907 = vmatprep.subr.mxu0 0.0
    %1908 = vmatpush1.msra.mxu0 %v1678
    %1909 = vmatprep.subr.mxu0 0.0
    %1910 = vmatpush1.msra.mxu0 %v1679
    %1911 = vmatprep.subr.mxu0 0.0
    %1912 = vmatpush1.msra.mxu0 %v1680
    %1913 = vmatprep.subr.mxu0 0.0
    %1914 = vmatpush1.msra.mxu0 %v1681
    %1915 = vmatprep.subr.mxu0 0.0
    %1916 = vmatpush1.msra.mxu0 %v1682
    %1917 = vmatprep.subr.mxu0 0.0
    %1918 = vmatpush1.msra.mxu0 %v1683
    %1919 = vmatprep.subr.mxu0 0.0
    %1920 = vmatpush1.msra.mxu0 %v1684
    %1921 = vmatprep.subr.mxu0 0.0
    %1922 = vmatpush1.msra.mxu0 %v1685
    %1923 = vmatprep.subr.mxu0 0.0
    %1924 = vmatpush1.msra.mxu0 %v1686
    %1925 = vmatprep.subr.mxu0 0.0
    %1926 = vmatpush1.msra.mxu0 %v1687
    %1927 = vmatprep.subr.mxu0 0.0
    %1928 = vmatpush1.msra.mxu0 %v1688
    %1929 = vmatprep.subr.mxu0 0.0
    %1930 = vmatpush1.msra.mxu0 %v1689
    %1931 = vmatprep.subr.mxu0 0.0
    %1932 = vmatpush1.msra.mxu0 %v1690
    %1933 = vmatprep.subr.mxu0 0.0
    %1934 = vmatpush1.msra.mxu0 %v1691
    %1935 = vmatprep.subr.mxu0 0.0
    %1936 = vmatpush1.msra.mxu0 %v1692
    %1937 = vmatprep.subr.mxu0 0.0
    %1938 = vmatpush1.msra.mxu0 %v1693
    %1939 = vmatprep.subr.mxu0 0.0
    %1940 = vmatpush1.msra.mxu0 %v1694
    %1941 = vmatprep.subr.mxu0 0.0
    %1942 = vmatpush1.msra.mxu0 %v1695
    %1943 = vmatprep.subr.mxu0 0.0
    %1944 = vmatpush1.msra.mxu0 %v1696
    %1945 = vmatprep.subr.mxu0 0.0
    %1946 = vmatpush1.msra.mxu0 %v1697
    %1947 = vmatprep.mubr.f32.mxu0 %v1787
    %1948 = vmatmul.mubr.f32.gmra.mrb[0].mxu0 %v1785
    %v1949 = vpop.f32.mrb[0].mxu0
    %v1950 = vadd.f32 %v1880, %v1949
    %v1951 = vpop.f32.mrb[0].mxu0
    %1952 = vdwg.mxu0
    %1953 = vmatprep.subr.mxu0 0.0
    %1954 = vmatpush1.msra.mxu0 %v1698
    %1955 = vmatprep.subr.mxu0 0.0
    %1956 = vmatpush1.msra.mxu0 %v1699
    %1957 = vmatprep.subr.mxu0 0.0
    %1958 = vmatpush1.msra.mxu0 %v1700
    %1959 = vmatprep.subr.mxu0 0.0
    %1960 = vmatpush1.msra.mxu0 %v1701
    %1961 = vmatprep.subr.mxu0 0.0
    %1962 = vmatpush1.msra.mxu0 %v1702
    %1963 = vmatprep.subr.mxu0 0.0
    %1964 = vmatpush1.msra.mxu0 %v1703
    %1965 = vmatprep.subr.mxu0 0.0
    %1966 = vmatpush1.msra.mxu0 %v1704
    %1967 = vmatprep.subr.mxu0 0.0
    %1968 = vmatpush1.msra.mxu0 %v1705
    %1969 = vmatprep.subr.mxu0 0.0
    %1970 = vmatpush1.msra.mxu0 %v1706
    %1971 = vmatprep.subr.mxu0 0.0
    %1972 = vmatpush1.msra.mxu0 %v1707
    %1973 = vmatprep.subr.mxu0 0.0
    %1974 = vmatpush1.msra.mxu0 %v1708
    %1975 = vmatprep.subr.mxu0 0.0
    %1976 = vmatpush1.msra.mxu0 %v1709
    %1977 = vmatprep.subr.mxu0 0.0
    %1978 = vmatpush1.msra.mxu0 %v1710
    %1979 = vmatprep.subr.mxu0 0.0
    %1980 = vmatpush1.msra.mxu0 %v1711
    %1981 = vmatprep.subr.mxu0 0.0
    %1982 = vmatpush1.msra.mxu0 %v1712
    %1983 = vmatprep.subr.mxu0 0.0
    %1984 = vmatpush1.msra.mxu0 %v1713
    %1985 = vmatprep.subr.mxu0 0.0
    %1986 = vmatpush1.msra.mxu0 %v1714
    %1987 = vmatprep.subr.mxu0 0.0
    %1988 = vmatpush1.msra.mxu0 %v1715
    %1989 = vmatprep.subr.mxu0 0.0
    %1990 = vmatpush1.msra.mxu0 %v1716
    %1991 = vmatprep.subr.mxu0 0.0
    %1992 = vmatpush1.msra.mxu0 %v1717
    %1993 = vmatprep.subr.mxu0 0.0
    %1994 = vmatpush1.msra.mxu0 %v1718
    %1995 = vmatprep.subr.mxu0 0.0
    %1996 = vmatpush1.msra.mxu0 %v1719
    %1997 = vmatprep.subr.mxu0 0.0
    %1998 = vmatpush1.msra.mxu0 %v1720
    %1999 = vmatprep.subr.mxu0 0.0
    %2000 = vmatpush1.msra.mxu0 %v1721
    %2001 = vmatprep.subr.mxu0 0.0
    %2002 = vmatpush1.msra.mxu0 %v1722
    %2003 = vmatprep.subr.mxu0 0.0
    %2004 = vmatpush1.msra.mxu0 %v1723
    %2005 = vmatprep.subr.mxu0 0.0
    %2006 = vmatpush1.msra.mxu0 %v1724
    %2007 = vmatprep.subr.mxu0 0.0
    %2008 = vmatpush1.msra.mxu0 %v1725
    %2009 = vmatprep.subr.mxu0 0.0
    %2010 = vmatpush1.msra.mxu0 %v1726
    %2011 = vmatprep.subr.mxu0 0.0
    %2012 = vmatpush1.msra.mxu0 %v1727
    %2013 = vmatprep.subr.mxu0 0.0
    %2014 = vmatpush1.msra.mxu0 %v1728
    %2015 = vmatprep.subr.mxu0 0.0
    %2016 = vmatpush1.msra.mxu0 %v1729
    %2017 = vmatprep.mubr.f32.mxu0 %v1803
    %2018 = vmatmul.mubr.f32.gmra.mrb[0].mxu0 %v1795
    %v2019 = vpop.f32.mrb[0].mxu0
    %v2020 = vadd.f32 %v1950, %v2019
    %v2021 = vpop.f32.mrb[0].mxu0
    %2022 = vdwg.mxu0
    %2023 = vmatprep.subr.mxu0 0.0
    %2024 = vmatpush1.msra.mxu0 %v1730
    %2025 = vmatprep.subr.mxu0 0.0
    %2026 = vmatpush1.msra.mxu0 %v1731
    %2027 = vmatprep.subr.mxu0 0.0
    %2028 = vmatpush1.msra.mxu0 %v1732
    %2029 = vmatprep.subr.mxu0 0.0
    %2030 = vmatpush1.msra.mxu0 %v1733
    %2031 = vmatprep.subr.mxu0 0.0
    %2032 = vmatpush1.msra.mxu0 %v1734
    %2033 = vmatprep.subr.mxu0 0.0
    %2034 = vmatpush1.msra.mxu0 %v1735
    %2035 = vmatprep.subr.mxu0 0.0
    %2036 = vmatpush1.msra.mxu0 %v1736
    %2037 = vmatprep.subr.mxu0 0.0
    %2038 = vmatpush1.msra.mxu0 %v1737
    %2039 = vmatprep.subr.mxu0 0.0
    %2040 = vmatpush1.msra.mxu0 %v1738
    %2041 = vmatprep.subr.mxu0 0.0
    %2042 = vmatpush1.msra.mxu0 %v1739
    %2043 = vmatprep.subr.mxu0 0.0
    %2044 = vmatpush1.msra.mxu0 %v1740
    %2045 = vmatprep.subr.mxu0 0.0
    %2046 = vmatpush1.msra.mxu0 %v1741
    %2047 = vmatprep.subr.mxu0 0.0
    %2048 = vmatpush1.msra.mxu0 %v1742
    %2049 = vmatprep.subr.mxu0 0.0
    %2050 = vmatpush1.msra.mxu0 %v1743
    %2051 = vmatprep.subr.mxu0 0.0
    %2052 = vmatpush1.msra.mxu0 %v1744
    %2053 = vmatprep.subr.mxu0 0.0
    %2054 = vmatpush1.msra.mxu0 %v1745
    %2055 = vmatprep.subr.mxu0 0.0
    %2056 = vmatpush1.msra.mxu0 %v1746
    %2057 = vmatprep.subr.mxu0 0.0
    %2058 = vmatpush1.msra.mxu0 %v1747
    %2059 = vmatprep.subr.mxu0 0.0
    %2060 = vmatpush1.msra.mxu0 %v1748
    %2061 = vmatprep.subr.mxu0 0.0
    %2062 = vmatpush1.msra.mxu0 %v1749
    %2063 = vmatprep.subr.mxu0 0.0
    %2064 = vmatpush1.msra.mxu0 %v1750
    %2065 = vmatprep.subr.mxu0 0.0
    %2066 = vmatpush1.msra.mxu0 %v1751
    %2067 = vmatprep.subr.mxu0 0.0
    %2068 = vmatpush1.msra.mxu0 %v1752
    %2069 = vmatprep.subr.mxu0 0.0
    %2070 = vmatpush1.msra.mxu0 %v1753
    %2071 = vmatprep.subr.mxu0 0.0
    %2072 = vmatpush1.msra.mxu0 %v1754
    %2073 = vmatprep.subr.mxu0 0.0
    %2074 = vmatpush1.msra.mxu0 %v1755
    %2075 = vmatprep.subr.mxu0 0.0
    %2076 = vmatpush1.msra.mxu0 %v1756
    %2077 = vmatprep.subr.mxu0 0.0
    %2078 = vmatpush1.msra.mxu0 %v1757
    %2079 = vmatprep.subr.mxu0 0.0
    %2080 = vmatpush1.msra.mxu0 %v1758
    %2081 = vmatprep.subr.mxu0 0.0
    %2082 = vmatpush1.msra.mxu0 %v1759
    %2083 = vmatprep.subr.mxu0 0.0
    %2084 = vmatpush1.msra.mxu0 %v1760
    %2085 = vmatprep.subr.mxu0 0.0
    %2086 = vmatpush1.msra.mxu0 %v1761
    %2087 = vmatprep.mubr.f32.mxu0 %v1804
    %2088 = vmatmul.mubr.f32.gmra.mrb[0].mxu0 %v1802
    %v2089 = vpop.f32.mrb[0].mxu0
    %v2090 = vadd.f32 %v2020, %v2089
    %v2091 = vpop.f32.mrb[0].mxu0
    %2092 = vdwg.mxu0
    %v2093 = vmax.f32 %v2090, 0.0
    %v2094 = vld [vmem:[#allocation6] sm:$0xff]
    %v2095 = vld [vmem:[#allocation6 + $0x8] sm:$0xff]
    %v2096 = vld [vmem:[#allocation6 + $0x10] sm:$0xff]
    %v2097 = vld [vmem:[#allocation6 + $0x18] sm:$0xff]
    %v2098 = vld [vmem:[#allocation6 + $0x20] sm:$0xff]
    %v2099 = vld [vmem:[#allocation6 + $0x28] sm:$0xff]
    %v2100 = vld [vmem:[#allocation6 + $0x30] sm:$0xff]
    %v2101 = vld [vmem:[#allocation6 + $0x38] sm:$0xff]
    %v2102 = vld [vmem:[#allocation6 + $0x40] sm:$0xff]
    %v2103 = vld [vmem:[#allocation6 + $0x48] sm:$0xff]
    %v2104 = vld [vmem:[#allocation6 + $0x50] sm:$0xff]
    %v2105 = vld [vmem:[#allocation6 + $0x58] sm:$0xff]
    %v2106 = vld [vmem:[#allocation6 + $0x60] sm:$0xff]
    %v2107 = vld [vmem:[#allocation6 + $0x68] sm:$0xff]
    %v2108 = vld [vmem:[#allocation6 + $0x70] sm:$0xff]
    %v2109 = vld [vmem:[#allocation6 + $0x78] sm:$0xff]
    %v2110 = vld [vmem:[%s10] sm:$0x1]
    %v2112 = vlaneseq
    %v2113 = vshrl.u32 %v2112, 7
    %v2114 = vsub.s32 0, %v2113
    %v2115 = vrot.slane %v2110, %v2114
    %2117 = vmatprep.subr.mxu0 0.0
    %2118 = vmatpush1.msra.mxu0 %v2094
    %2119 = vmatprep.subr.mxu0 0.0
    %2120 = vmatpush1.msra.mxu0 %v2095
    %2121 = vmatprep.subr.mxu0 0.0
    %2122 = vmatpush1.msra.mxu0 %v2096
    %2123 = vmatprep.subr.mxu0 0.0
    %2124 = vmatpush1.msra.mxu0 %v2097
    %2125 = vmatprep.subr.mxu0 0.0
    %2126 = vmatpush1.msra.mxu0 %v2098
    %2127 = vmatprep.subr.mxu0 0.0
    %2128 = vmatpush1.msra.mxu0 %v2099
    %2129 = vmatprep.subr.mxu0 0.0
    %2130 = vmatpush1.msra.mxu0 %v2100
    %2131 = vmatprep.subr.mxu0 0.0
    %2132 = vmatpush1.msra.mxu0 %v2101
    %2133 = vmatprep.subr.mxu0 0.0
    %2134 = vmatpush1.msra.mxu0 %v2102
    %2135 = vmatprep.subr.mxu0 0.0
    %2136 = vmatpush1.msra.mxu0 %v2103
    %2137 = vmatprep.subr.mxu0 0.0
    %2138 = vmatpush1.msra.mxu0 %v2104
    %2139 = vmatprep.subr.mxu0 0.0
    %2140 = vmatpush1.msra.mxu0 %v2105
    %2141 = vmatprep.subr.mxu0 0.0
    %2142 = vmatpush1.msra.mxu0 %v2106
    %2143 = vmatprep.subr.mxu0 0.0
    %2144 = vmatpush1.msra.mxu0 %v2107
    %2145 = vmatprep.subr.mxu0 0.0
    %2146 = vmatpush1.msra.mxu0 %v2108
    %2147 = vmatprep.subr.mxu0 0.0
    %2148 = vmatpush1.msra.mxu0 %v2109
    %2149 = vmatprep.subr.mxu0 0.0
    %2150 = vmatpush1.msra.mxu0 0.0
    %2151 = vmatprep.subr.mxu0 0.0
    %2152 = vmatpush1.msra.mxu0 0.0
    %2153 = vmatprep.subr.mxu0 0.0
    %2154 = vmatpush1.msra.mxu0 0.0
    %2155 = vmatprep.subr.mxu0 0.0
    %2156 = vmatpush1.msra.mxu0 0.0
    %2157 = vmatprep.subr.mxu0 0.0
    %2158 = vmatpush1.msra.mxu0 0.0
    %2159 = vmatprep.subr.mxu0 0.0
    %2160 = vmatpush1.msra.mxu0 0.0
    %2161 = vmatprep.subr.mxu0 0.0
    %2162 = vmatpush1.msra.mxu0 0.0
    %2163 = vmatprep.subr.mxu0 0.0
    %2164 = vmatpush1.msra.mxu0 0.0
    %2165 = vmatprep.subr.mxu0 0.0
    %2166 = vmatpush1.msra.mxu0 0.0
    %2167 = vmatprep.subr.mxu0 0.0
    %2168 = vmatpush1.msra.mxu0 0.0
    %2169 = vmatprep.subr.mxu0 0.0
    %2170 = vmatpush1.msra.mxu0 0.0
    %2171 = vmatprep.subr.mxu0 0.0
    %2172 = vmatpush1.msra.mxu0 0.0
    %2173 = vmatprep.subr.mxu0 0.0
    %2174 = vmatpush1.msra.mxu0 0.0
    %2175 = vmatprep.subr.mxu0 0.0
    %2176 = vmatpush1.msra.mxu0 0.0
    %2177 = vmatprep.subr.mxu0 0.0
    %2178 = vmatpush1.msra.mxu0 0.0
    %2179 = vmatprep.subr.mxu0 0.0
    %2180 = vmatpush1.msra.mxu0 0.0
    %2181 = vmatprep.mubr.f32.mxu0 0.0
    %2182 = vmatmul.mubr.f32.gmra.mrb[0].mxu0 %v2093
    %v2183 = vpop.f32.mrb[0].mxu0
    %v2184 = vadd.f32 %v2115, %v2183
    %v2185 = vpop.f32.mrb[0].mxu0
    %2186 = vdwg.mxu0
    %v2187 = vmax.f32 %v2184, 0.0
    %v2188 = vld [vmem:[#allocation9] sm:$0xff]
    %v2189 = vld [vmem:[#allocation9 + $0x8] sm:$0xff]
    %v2190 = vld [vmem:[#allocation9 + $0x10] sm:$0xff]
    %v2191 = vld [vmem:[#allocation9 + $0x18] sm:$0xff]
    %v2192 = vld [vmem:[#allocation9 + $0x20] sm:$0xff]
    %v2193 = vld [vmem:[#allocation9 + $0x28] sm:$0xff]
    %v2194 = vld [vmem:[#allocation9 + $0x30] sm:$0xff]
    %v2195 = vld [vmem:[#allocation9 + $0x38] sm:$0xff]
    %v2196 = vld [vmem:[#allocation9 + $0x40] sm:$0xff]
    %v2197 = vld [vmem:[#allocation9 + $0x48] sm:$0xff]
    %v2198 = vld [vmem:[#allocation9 + $0x50] sm:$0xff]
    %v2199 = vld [vmem:[#allocation9 + $0x58] sm:$0xff]
    %v2200 = vld [vmem:[#allocation9 + $0x60] sm:$0xff]
    %v2201 = vld [vmem:[#allocation9 + $0x68] sm:$0xff]
    %v2202 = vld [vmem:[#allocation9 + $0x70] sm:$0xff]
    %v2203 = vld [vmem:[#allocation9 + $0x78] sm:$0xff]
    %v2204 = vld [vmem:[%s12] sm:$0x1]
    %v2206 = vlaneseq
    %v2207 = vshrl.u32 %v2206, 7
    %v2208 = vsub.s32 0, %v2207
    %v2209 = vrot.slane %v2204, %v2208
    %2211 = vmatprep.subr.mxu0 0.0
    %2212 = vmatpush1.msra.mxu0 %v2188
    %2213 = vmatprep.subr.mxu0 0.0
    %2214 = vmatpush1.msra.mxu0 %v2189
    %2215 = vmatprep.subr.mxu0 0.0
    %2216 = vmatpush1.msra.mxu0 %v2190
    %2217 = vmatprep.subr.mxu0 0.0
    %2218 = vmatpush1.msra.mxu0 %v2191
    %2219 = vmatprep.subr.mxu0 0.0
    %2220 = vmatpush1.msra.mxu0 %v2192
    %2221 = vmatprep.subr.mxu0 0.0
    %2222 = vmatpush1.msra.mxu0 %v2193
    %2223 = vmatprep.subr.mxu0 0.0
    %2224 = vmatpush1.msra.mxu0 %v2194
    %2225 = vmatprep.subr.mxu0 0.0
    %2226 = vmatpush1.msra.mxu0 %v2195
    %2227 = vmatprep.subr.mxu0 0.0
    %2228 = vmatpush1.msra.mxu0 %v2196
    %2229 = vmatprep.subr.mxu0 0.0
    %2230 = vmatpush1.msra.mxu0 %v2197
    %2231 = vmatprep.subr.mxu0 0.0
    %2232 = vmatpush1.msra.mxu0 %v2198
    %2233 = vmatprep.subr.mxu0 0.0
    %2234 = vmatpush1.msra.mxu0 %v2199
    %2235 = vmatprep.subr.mxu0 0.0
    %2236 = vmatpush1.msra.mxu0 %v2200
    %2237 = vmatprep.subr.mxu0 0.0
    %2238 = vmatpush1.msra.mxu0 %v2201
    %2239 = vmatprep.subr.mxu0 0.0
    %2240 = vmatpush1.msra.mxu0 %v2202
    %2241 = vmatprep.subr.mxu0 0.0
    %2242 = vmatpush1.msra.mxu0 %v2203
    %2243 = vmatprep.subr.mxu0 0.0
    %2244 = vmatpush1.msra.mxu0 0.0
    %2245 = vmatprep.subr.mxu0 0.0
    %2246 = vmatpush1.msra.mxu0 0.0
    %2247 = vmatprep.subr.mxu0 0.0
    %2248 = vmatpush1.msra.mxu0 0.0
    %2249 = vmatprep.subr.mxu0 0.0
    %2250 = vmatpush1.msra.mxu0 0.0
    %2251 = vmatprep.subr.mxu0 0.0
    %2252 = vmatpush1.msra.mxu0 0.0
    %2253 = vmatprep.subr.mxu0 0.0
    %2254 = vmatpush1.msra.mxu0 0.0
    %2255 = vmatprep.subr.mxu0 0.0
    %2256 = vmatpush1.msra.mxu0 0.0
    %2257 = vmatprep.subr.mxu0 0.0
    %2258 = vmatpush1.msra.mxu0 0.0
    %2259 = vmatprep.subr.mxu0 0.0
    %2260 = vmatpush1.msra.mxu0 0.0
    %2261 = vmatprep.subr.mxu0 0.0
    %2262 = vmatpush1.msra.mxu0 0.0
    %2263 = vmatprep.subr.mxu0 0.0
    %2264 = vmatpush1.msra.mxu0 0.0
    %2265 = vmatprep.subr.mxu0 0.0
    %2266 = vmatpush1.msra.mxu0 0.0
    %2267 = vmatprep.subr.mxu0 0.0
    %2268 = vmatpush1.msra.mxu0 0.0
    %2269 = vmatprep.subr.mxu0 0.0
    %2270 = vmatpush1.msra.mxu0 0.0
    %2271 = vmatprep.subr.mxu0 0.0
    %2272 = vmatpush1.msra.mxu0 0.0
    %2273 = vmatprep.subr.mxu0 0.0
    %2274 = vmatpush1.msra.mxu0 0.0
    %2275 = vmatprep.mubr.f32.mxu0 0.0
    %2276 = vmatmul.mubr.f32.gmra.mrb[0].mxu0 %v2187
    %v2277 = vpop.f32.mrb[0].mxu0
    %v2278 = vadd.f32 %v2209, %v2277
    %v2279 = vpop.f32.mrb[0].mxu0
    %2280 = vdwg.mxu0
    %v2281 = vmax.f32 %v2278, 0.0
    %v2282 = vld [vmem:[#allocation11] sm:$0xff]
    %v2283 = vld [vmem:[#allocation11 + $0x8] sm:$0xff]
    %v2284 = vld [vmem:[#allocation11 + $0x10] sm:$0xff]
    %v2285 = vld [vmem:[#allocation11 + $0x18] sm:$0xff]
    %v2286 = vld [vmem:[#allocation11 + $0x20] sm:$0xff]
    %v2287 = vld [vmem:[#allocation11 + $0x28] sm:$0xff]
    %v2288 = vld [vmem:[#allocation11 + $0x30] sm:$0xff]
    %v2289 = vld [vmem:[#allocation11 + $0x38] sm:$0xff]
    %v2290 = vld [vmem:[#allocation11 + $0x40] sm:$0xff]
    %v2291 = vld [vmem:[#allocation11 + $0x48] sm:$0xff]
    %v2292 = vld [vmem:[#allocation11 + $0x50] sm:$0xff]
    %v2293 = vld [vmem:[#allocation11 + $0x58] sm:$0xff]
    %v2294 = vld [vmem:[#allocation11 + $0x60] sm:$0xff]
    %v2295 = vld [vmem:[#allocation11 + $0x68] sm:$0xff]
    %v2296 = vld [vmem:[#allocation11 + $0x70] sm:$0xff]
    %v2297 = vld [vmem:[#allocation11 + $0x78] sm:$0xff]
    %v2298 = vld [vmem:[%s14] sm:$0x1]
    %v2300 = vlaneseq
    %v2301 = vshrl.u32 %v2300, 7
    %v2302 = vsub.s32 0, %v2301
    %v2303 = vrot.slane %v2298, %v2302
    %2305 = vmatprep.subr.mxu0 0.0
    %2306 = vmatpush1.msra.mxu0 %v2282
    %2307 = vmatprep.subr.mxu0 0.0
    %2308 = vmatpush1.msra.mxu0 %v2283
    %2309 = vmatprep.subr.mxu0 0.0
    %2310 = vmatpush1.msra.mxu0 %v2284
    %2311 = vmatprep.subr.mxu0 0.0
    %2312 = vmatpush1.msra.mxu0 %v2285
    %2313 = vmatprep.subr.mxu0 0.0
    %2314 = vmatpush1.msra.mxu0 %v2286
    %2315 = vmatprep.subr.mxu0 0.0
    %2316 = vmatpush1.msra.mxu0 %v2287
    %2317 = vmatprep.subr.mxu0 0.0
    %2318 = vmatpush1.msra.mxu0 %v2288
    %2319 = vmatprep.subr.mxu0 0.0
    %2320 = vmatpush1.msra.mxu0 %v2289
    %2321 = vmatprep.subr.mxu0 0.0
    %2322 = vmatpush1.msra.mxu0 %v2290
    %2323 = vmatprep.subr.mxu0 0.0
    %2324 = vmatpush1.msra.mxu0 %v2291
    %2325 = vmatprep.subr.mxu0 0.0
    %2326 = vmatpush1.msra.mxu0 %v2292
    %2327 = vmatprep.subr.mxu0 0.0
    %2328 = vmatpush1.msra.mxu0 %v2293
    %2329 = vmatprep.subr.mxu0 0.0
    %2330 = vmatpush1.msra.mxu0 %v2294
    %2331 = vmatprep.subr.mxu0 0.0
    %2332 = vmatpush1.msra.mxu0 %v2295
    %2333 = vmatprep.subr.mxu0 0.0
    %2334 = vmatpush1.msra.mxu0 %v2296
    %2335 = vmatprep.subr.mxu0 0.0
    %2336 = vmatpush1.msra.mxu0 %v2297
    %2337 = vmatprep.subr.mxu0 0.0
    %2338 = vmatpush1.msra.mxu0 0.0
    %2339 = vmatprep.subr.mxu0 0.0
    %2340 = vmatpush1.msra.mxu0 0.0
    %2341 = vmatprep.subr.mxu0 0.0
    %2342 = vmatpush1.msra.mxu0 0.0
    %2343 = vmatprep.subr.mxu0 0.0
    %2344 = vmatpush1.msra.mxu0 0.0
    %2345 = vmatprep.subr.mxu0 0.0
    %2346 = vmatpush1.msra.mxu0 0.0
    %2347 = vmatprep.subr.mxu0 0.0
    %2348 = vmatpush1.msra.mxu0 0.0
    %2349 = vmatprep.subr.mxu0 0.0
    %2350 = vmatpush1.msra.mxu0 0.0
    %2351 = vmatprep.subr.mxu0 0.0
    %2352 = vmatpush1.msra.mxu0 0.0
    %2353 = vmatprep.subr.mxu0 0.0
    %2354 = vmatpush1.msra.mxu0 0.0
    %2355 = vmatprep.subr.mxu0 0.0
    %2356 = vmatpush1.msra.mxu0 0.0
    %2357 = vmatprep.subr.mxu0 0.0
    %2358 = vmatpush1.msra.mxu0 0.0
    %2359 = vmatprep.subr.mxu0 0.0
    %2360 = vmatpush1.msra.mxu0 0.0
    %2361 = vmatprep.subr.mxu0 0.0
    %2362 = vmatpush1.msra.mxu0 0.0
    %2363 = vmatprep.subr.mxu0 0.0
    %2364 = vmatpush1.msra.mxu0 0.0
    %2365 = vmatprep.subr.mxu0 0.0
    %2366 = vmatpush1.msra.mxu0 0.0
    %2367 = vmatprep.subr.mxu0 0.0
    %2368 = vmatpush1.msra.mxu0 0.0
    %2369 = vmatprep.mubr.f32.mxu0 0.0
    %2370 = vmatmul.mubr.f32.gmra.mrb[0].mxu0 %v2281
    %v2371 = vpop.f32.mrb[0].mxu0
    %v2372 = vadd.f32 %v2303, %v2371
    %v2373 = vpop.f32.mrb[0].mxu0
    %2374 = vdwg.mxu0
    %2375 = vst [vmem:[#allocation12] sm:$0x3] %v2372
    // Predicated region
    $region74: #{dqn_forward.1} parent=1 // pred_check
      _
    $region75: #{dqn_forward.1} parent=1 // pred_check_branch
      %2377 = sbr.rel (0) target = $region77
    $region76: #{dqn_forward.1} parent=1 // pred_region
      %s2379 = ssub.s32 32, 32
      %2380 = vsyncadd [#allocation8], %s2379
      %s2382 = sshll.u32 [#allocation12], 4
      %s2383 = int_to_ptr.vmem [resolvable:$true] %s2382
      %2385 = dma.vmem_to_hbm [thread:$0]  %s2383, 32, %s15, [#allocation8]
    $region77: #{dqn_forward.1} parent=1 // pred_fallthru
      _
    // Predicated region
    $region78: #{dqn_forward.1} parent=1 // pred_check
      _
    $region79: #{dqn_forward.1} parent=1 // pred_check_branch
      %2387 = sbr.rel (0) target = $region81
    $region80: #{dqn_forward.1} parent=1 // pred_region
      %2388 = dma.done [#allocation8], 32
    $region81: #{dqn_forward.1} parent=1 // pred_fallthru
      _
    %2389 = vsyncpa [#allocation7], 1
    %2390 = vsyncpa [#allocation10], 1
    %2391 = vsyncpa [#allocation8], 1

</llo_original>
